<compile_context>
chip_gen: v5e
topology: v5e:2x2
jax: 0.10.0
libtpu: 0.0.40
codegen_flags: <defaults>
</compile_context>

<pallas_src>
import math

import jax
import jax.numpy as jnp
from jax.experimental import pallas as pl
from jax.experimental.pallas import tpu as pltpu

_HALF_PI = math.pi / 2.0
_VMEM_LIMIT = 32 * 1024 * 1024          # <= 64 MiB physical on v7x, with headroom
_FUSED_VMEM_BUDGET = 24 * 1024 * 1024   # conservative gate for the fused path


# ---------------------------------------------------------------------------
# FourierAct helper: sin on even lanes, cos on odd lanes (cos(x)==sin(x+pi/2)).
# Valid as long as the block's last-dim offset is even, which holds because all
# last-dim blocks below are multiples of 128 or span the full dim.
# ---------------------------------------------------------------------------
def _fourier_f32(x):
    shape = (1,) * (x.ndim - 1) + (x.shape[-1],)
    lane = jax.lax.broadcasted_iota(jnp.int32, shape, x.ndim - 1)
    phase = (lane % 2).astype(jnp.float32) * _HALF_PI
    return jnp.sin(x.astype(jnp.float32) + phase)


# ---------------------------------------------------------------------------
# Block-size helpers.
# ---------------------------------------------------------------------------
def _divisor_block(full, pref, quantum):
    t = (min(pref, full) // quantum) * quantum
    while t >= quantum:
        if full % t == 0:
            return t
        t -= quantum
    return None


def _lane_block(full, pref):
    """Lane-mapped axis block: multiple of 128 dividing `full`, or the full dim."""
    if full <= pref:
        return full
    t = _divisor_block(full, pref, 128)
    return t if t is not None else full


def _row_block_and_pad(rows, pref):
    """(row block, zero-padding rows). Prefers >= 2 row blocks so the 'parallel'
    row grid axis keeps both v7x TensorCores busy."""
    if rows % 8 == 0:
        cands = [t for t in range(8, min(pref, rows) + 1, 8) if rows % t == 0]
        if cands:
            multi = [t for t in cands if rows // t >= 2]
            return (max(multi) if multi else max(cands)), 0
    # TODO(synk): ragged row counts with no multiple-of-8 divisor pay one pad copy.
    bm = min(pref, max(8, (((rows + 1) // 2) + 7) // 8 * 8))
    padded = -(-rows // bm) * bm
    return bm, padded - rows


def _fused_fits_vmem(bm, d_in, h, d_out, itemsize):
    weight_bytes = (d_in * h + 3 * h * h + h * d_out) * itemsize
    bias_bytes = (3 * h + d_out) * itemsize
    # x / out row tiles double-buffered; intermediates are f32 (bm, h).
    act_bytes = 2 * bm * (d_in + d_out) * itemsize + 6 * bm * h * 4
    return 2 * (weight_bytes + bias_bytes) + act_bytes <= _FUSED_VMEM_BUDGET


# ---------------------------------------------------------------------------
# Fully fused kernel: grid over row blocks only, weights VMEM-resident.
# ---------------------------------------------------------------------------
def _fused_mlp_kernel(x_ref, w1_ref, b1_ref, w2t_ref, w2b_ref, b2_ref,
                      w3_ref, b3_ref, w4_ref, b4_ref, o_ref):
    f32 = jnp.float32
    h_dim = w1_ref.shape[1]
    # Hoisted FourierAct phase row, reused by all three activations.
    lane = jax.lax.broadcasted_iota(jnp.int32, (1, h_dim), 1)
    phase = (lane % 2).astype(f32) * _HALF_PI

    x = x_ref[...]
    h1 = jnp.dot(x, w1_ref[...], preferred_element_type=f32) + b1_ref[...].astype(f32)
    f1 = jnp.sin(h1 + phase)
    # cat([h1, F(h1)], -1) @ W2 == h1 @ W2[:H] + F(h1) @ W2[H:]
    h2 = (jnp.dot(h1, w2t_ref[...], preferred_element_type=f32)
          + jnp.dot(f1, w2b_ref[...], preferred_element_type=f32)
          + b2_ref[...].astype(f32))
    a2 = jnp.sin(h2 + phase)
    h3 = jnp.dot(a2, w3_ref[...], preferred_element_type=f32) + b3_ref[...].astype(f32)
    a3 = jnp.sin(h3 + phase)
    out = jnp.dot(a3, w4_ref[...], preferred_element_type=f32) + b4_ref[...].astype(f32)
    o_ref[...] = out.astype(o_ref.dtype)


def _fused_mlp_pallas(x2, w1, b1, w2t, w2b, b2, w3, b3, w4, b4, *, bm):
    M, D = x2.shape
    Dout = w4.shape[1]
    b1r, b2r, b3r, b4r = (b.reshape(1, -1) for b in (b1, b2, b3, b4))

    def full_spec(a):
        return pl.BlockSpec(a.shape, lambda i: (0,) * a.ndim)

    return pl.pallas_call(
        _fused_mlp_kernel,
        out_shape=jax.ShapeDtypeStruct((M, Dout), x2.dtype),
        grid_spec=pltpu.PrefetchScalarGridSpec(
            num_scalar_prefetch=0,
            grid=(M // bm,),
            in_specs=[
                pl.BlockSpec((bm, D), lambda i: (i, 0)),
                full_spec(w1), full_spec(b1r),
                full_spec(w2t), full_spec(w2b), full_spec(b2r),
                full_spec(w3), full_spec(b3r),
                full_spec(w4), full_spec(b4r),
            ],
            out_specs=pl.BlockSpec((bm, Dout), lambda i: (i, 0)),
        ),
        compiler_params=pltpu.CompilerParams(
            dimension_semantics=("parallel",),
            vmem_limit_bytes=_VMEM_LIMIT),
    )(x2, w1, b1r, w2t, w2b, b2r, w3, b3r, w4, b4r)


# ---------------------------------------------------------------------------
# Per-layer fallback kernels (weights too large to keep VMEM-resident).
# ---------------------------------------------------------------------------
def _make_linear_kernel(fourier_out, acc_into_out):
    def kernel(x_ref, w_ref, b_ref, o_ref, *scratch):
        acc_ref = o_ref if acc_into_out else scratch[0]
        k = pl.program_id(2)

        @pl.when(k == 0)
        def _():
            acc_ref[...] = jnp.zeros_like(acc_ref)

        acc_ref[...] += jnp.dot(
            x_ref[...], w_ref[...],
            preferred_element_type=jnp.float32).astype(acc_ref.dtype)

        @pl.when(k == pl.num_programs(2) - 1)
        def _():
            y = acc_ref[...].astype(jnp.float32) + b_ref[...].astype(jnp.float32)
            if fourier_out:
                y = _fourier_f32(y)
            o_ref[...] = y.astype(o_ref.dtype)

    return kernel


def _make_cat_linear_kernel(fourier_out, acc_into_out):
    def kernel(x_ref, wt_ref, wb_ref, b_ref, o_ref, *scratch):
        acc_ref = o_ref if acc_into_out else scratch[0]
        k = pl.program_id(2)

        @pl.when(k == 0)
        def _():
            acc_ref[...] = jnp.zeros_like(acc_ref)

        x = x_ref[...]
        fx = _fourier_f32(x).astype(x.dtype)
        contrib = (jnp.dot(x, wt_ref[...], preferred_element_type=jnp.float32)
                   + jnp.dot(fx, wb_ref[...], preferred_element_type=jnp.float32))
        acc_ref[...] += contrib.astype(acc_ref.dtype)

        @pl.when(k == pl.num_programs(2) - 1)
        def _():
            y = acc_ref[...].astype(jnp.float32) + b_ref[...].astype(jnp.float32)
            if fourier_out:
                y = _fourier_f32(y)
            o_ref[...] = y.astype(o_ref.dtype)

    return kernel


def _linear_pallas(x, w, b, *, fourier_out, bm, bn_pref=512, bk_pref=512):
    M, K = x.shape
    Kw, N = w.shape
    assert Kw == K
    bn = _lane_block(N, bn_pref)
    bk = _lane_block(K, bk_pref)
    if fourier_out:
        assert bn % 2 == 0 or bn == N, "FourierAct needs even last-dim block offsets"
    acc_into_out = x.dtype == jnp.float32
    scratch = [] if acc_into_out else [pltpu.VMEM((bm, bn), jnp.float32)]
    return pl.pallas_call(
        _make_linear_kernel(fourier_out, acc_into_out),
        out_shape=jax.ShapeDtypeStruct((M, N), x.dtype),
        grid_spec=pltpu.PrefetchScalarGridSpec(
            num_scalar_prefetch=0,
            grid=(M // bm, N // bn, K // bk),
            in_specs=[
                pl.BlockSpec((bm, bk), lambda i, j, k: (i, k)),
                pl.BlockSpec((bk, bn), lambda i, j, k: (k, j)),
                pl.BlockSpec((1, bn), lambda i, j, k: (0, j)),
            ],
            out_specs=pl.BlockSpec((bm, bn), lambda i, j, k: (i, j)),
            scratch_shapes=scratch,
        ),
        compiler_params=pltpu.CompilerParams(
            dimension_semantics=("parallel", "parallel", "arbitrary"),
            vmem_limit_bytes=_VMEM_LIMIT),
    )(x, w, b.reshape(1, N))


def _cat_linear_pallas(h, w_top, w_bot, b, *, fourier_out, bm, bk_pref=512):
    M, K = h.shape
    Kw, N = w_top.shape
    assert Kw == K and w_bot.shape == (K, N)
    bk = _lane_block(K, bk_pref)
    # Prefer full output width: sin on the K-tile then runs exactly once per
    # (i, k) instead of once per (i, j, k), and the output stays lane-dense.
    itemsize = jnp.dtype(h.dtype).itemsize
    bn = N if 2 * (2 * bk * N * itemsize) <= 8 * 1024 * 1024 else _lane_block(N, 512)
    assert (bk % 2 == 0 or bk == K) and (bn % 2 == 0 or bn == N)
    acc_into_out = h.dtype == jnp.float32
    scratch = [] if acc_into_out else [pltpu.VMEM((bm, bn), jnp.float32)]
    return pl.pallas_call(
        _make_cat_linear_kernel(fourier_out, acc_into_out),
        out_shape=jax.ShapeDtypeStruct((M, N), h.dtype),
        grid_spec=pltpu.PrefetchScalarGridSpec(
            num_scalar_prefetch=0,
            grid=(M // bm, N // bn, K // bk),
            in_specs=[
                pl.BlockSpec((bm, bk), lambda i, j, k: (i, k)),
                pl.BlockSpec((bk, bn), lambda i, j, k: (k, j)),
                pl.BlockSpec((bk, bn), lambda i, j, k: (k, j)),
                pl.BlockSpec((1, bn), lambda i, j, k: (0, j)),
            ],
            out_specs=pl.BlockSpec((bm, bn), lambda i, j, k: (i, j)),
            scratch_shapes=scratch,
        ),
        compiler_params=pltpu.CompilerParams(
            dimension_semantics=("parallel", "parallel", "arbitrary"),
            vmem_limit_bytes=_VMEM_LIMIT),
    )(h, w_top, w_bot, b.reshape(1, N))


# ---------------------------------------------------------------------------
# FourierMLP forward
# ---------------------------------------------------------------------------
def fourier_mlp_forward(x, params, *, tm_pref=256):
    """JAX/Pallas equivalent of FourierMLP.forward. x: (..., dim)."""
    W1, b1, W2, b2, W3, b3, W4, b4 = params
    orig_shape = x.shape
    dim_in = orig_shape[-1]
    H = W1.shape[1]
    dim_out = W4.shape[1]
    # cat([h1, F(h1)]) @ W2 == h1 @ W2[:H] + F(h1) @ W2[H:]  (one-time split)
    W2_top, W2_bot = W2[:H], W2[H:]

    x2 = x.reshape(-1, dim_in)
    rows = x2.shape[0]
    bm, pad = _row_block_and_pad(rows, tm_pref)
    if pad:
        x2 = jnp.pad(x2, ((0, pad), (0, 0)))

    if _fused_fits_vmem(bm, dim_in, H, dim_out, jnp.dtype(W1.dtype).itemsize):
        out = _fused_mlp_pallas(x2, W1, b1, W2_top, W2_bot, b2, W3, b3, W4, b4, bm=bm)
    else:
        h1 = _linear_pallas(x2, W1, b1, fourier_out=False, bm=bm)      # Linear(dim, H)
        a2 = _cat_linear_pallas(h1, W2_top, W2_bot, b2,                 # cat-act + Linear(2H, H)
                                fourier_out=True, bm=bm)                # + FourierAct
        a3 = _linear_pallas(a2, W3, b3, fourier_out=True, bm=bm)        # Linear(H, H) + FourierAct
        out = _linear_pallas(a3, W4, b4, fourier_out=False, bm=bm)      # Linear(H, dim)

    if pad:
        out = out[:rows]
    return out.reshape(orig_shape[:-1] + (dim_out,))


# ---------------------------------------------------------------------------
# Plain-JAX reference matching the PyTorch semantics (f32-parity matmuls).
# ---------------------------------------------------------------------------
def _fourier_ref(x):
    out = jnp.zeros_like(x)
    out = out.at[..., 0::2].set(jnp.sin(x[..., 0::2]))
    out = out.at[..., 1::2].set(jnp.cos(x[..., 1::2]))
    return out


def _reference_mlp(x, params):
    W1, b1, W2, b2, W3, b3, W4, b4 = params
    hp = jax.lax.Precision.HIGHEST
    h1 = jnp.dot(x, W1, precision=hp) + b1
    a1 = jnp.concatenate([h1, _fourier_ref(h1)], axis=-1)
    h2 = jnp.dot(a1, W2, precision=hp) + b2
    a2 = _fourier_ref(h2)
    h3 = jnp.dot(a2, W3, precision=hp) + b3
    a3 = _fourier_ref(h3)
    return jnp.dot(a3, W4, precision=hp) + b4


if __name__ == "__main__":
    key = jax.random.PRNGKey(0)
    dim, expansion = 128, 2
    hidden = dim * expansion          # 256
    B, S = 2, 8                       # 16 rows -> bm=8 -> 2 "parallel" row blocks

    ks = jax.random.split(key, 9)
    x = jax.random.normal(ks[0], (B, S, dim), dtype=jnp.float32)

    def init_linear(kw, kb, fan_in, fan_out):
        w = jax.random.normal(kw, (fan_in, fan_out), jnp.float32) / float(fan_in) ** 0.5
        b = 0.5 * jax.random.normal(kb, (fan_out,), jnp.float32)
        return w, b

    W1, b1 = init_linear(ks[1], ks[2], dim, hidden)
    W2, b2 = init_linear(ks[3], ks[4], 2 * hidden, hidden)
    W3, b3 = init_linear(ks[5], ks[6], hidden, hidden)
    W4, b4 = init_linear(ks[7], ks[8], hidden, dim)
    params = (W1, b1, W2, b2, W3, b3, W4, b4)

    y = jax.block_until_ready(fourier_mlp_forward(x, params))
    y_ref = _reference_mlp(x, params)

    assert y.shape == (B, S, dim), y.shape
    # Kernel matmuls use the MXU's default single-pass numerics (per perf
    # review); the reference runs at HIGHEST, so allow bf16-pass error.
    max_err = float(jnp.max(jnp.abs(y - y_ref)))
    assert jnp.allclose(y, y_ref, atol=5e-2, rtol=5e-2), f"max err {max_err}"

    print("KERNEL_OK")
</pallas_src>

<mosaic_0001>
module attributes {stable_mosaic.version = 11 : i64} {
  func.func @_fused_mlp_kernel(%arg0: i32, %arg1: memref<8x128xf32, #tpu.memory_space<vmem>>, %arg2: memref<128x256xf32, #tpu.memory_space<vmem>>, %arg3: memref<1x256xf32, #tpu.memory_space<vmem>>, %arg4: memref<256x256xf32, #tpu.memory_space<vmem>>, %arg5: memref<256x256xf32, #tpu.memory_space<vmem>>, %arg6: memref<1x256xf32, #tpu.memory_space<vmem>>, %arg7: memref<256x256xf32, #tpu.memory_space<vmem>>, %arg8: memref<1x256xf32, #tpu.memory_space<vmem>>, %arg9: memref<256x128xf32, #tpu.memory_space<vmem>>, %arg10: memref<1x128xf32, #tpu.memory_space<vmem>>, %arg11: memref<8x128xf32, #tpu.memory_space<vmem>>) attributes {dimension_semantics = [#tpu.dimension_semantics<parallel>], iteration_bounds = array<i64: 2>, scalar_prefetch = 0 : i64, scratch_operands = 0 : i64, tpu.core_type = #tpu.core_type<tc>, window_params = [{transform_indices = @transform_0, window_bounds = array<i64: 8, 128>}, {pipeline_mode = #tpu.pipeline_mode<synchronous>, transform_indices = @transform_1, window_bounds = array<i64: 128, 256>}, {pipeline_mode = #tpu.pipeline_mode<synchronous>, transform_indices = @transform_2, window_bounds = array<i64: 1, 256>}, {pipeline_mode = #tpu.pipeline_mode<synchronous>, transform_indices = @transform_3, window_bounds = array<i64: 256, 256>}, {pipeline_mode = #tpu.pipeline_mode<synchronous>, transform_indices = @transform_4, window_bounds = array<i64: 256, 256>}, {pipeline_mode = #tpu.pipeline_mode<synchronous>, transform_indices = @transform_5, window_bounds = array<i64: 1, 256>}, {pipeline_mode = #tpu.pipeline_mode<synchronous>, transform_indices = @transform_6, window_bounds = array<i64: 256, 256>}, {pipeline_mode = #tpu.pipeline_mode<synchronous>, transform_indices = @transform_7, window_bounds = array<i64: 1, 256>}, {pipeline_mode = #tpu.pipeline_mode<synchronous>, transform_indices = @transform_8, window_bounds = array<i64: 256, 128>}, {pipeline_mode = #tpu.pipeline_mode<synchronous>, transform_indices = @transform_9, window_bounds = array<i64: 1, 128>}, {transform_indices = @transform_10, window_bounds = array<i64: 8, 128>}]} {
    %0 = tpu.iota {dimensions = array<i32: 1>} : vector<1x256xi32>
    %c2_i32 = arith.constant 2 : i32
    %c0_i32 = arith.constant 0 : i32
    %1 = arith.cmpi eq, %c2_i32, %c0_i32 : i32
    %c1_i32 = arith.constant 1 : i32
    %2 = arith.select %1, %c1_i32, %c2_i32 : i32
    %3 = vector.broadcast %2 : i32 to vector<1x256xi32>
    %4 = arith.remsi %0, %3 : vector<1x256xi32>
    %c0_i32_0 = arith.constant 0 : i32
    %5 = vector.broadcast %c0_i32_0 : i32 to vector<1x256xi32>
    %6 = arith.cmpi ne, %4, %5 : vector<1x256xi32>
    %c0_i32_1 = arith.constant 0 : i32
    %7 = vector.broadcast %c0_i32_1 : i32 to vector<1x256xi32>
    %8 = arith.cmpi slt, %4, %7 : vector<1x256xi32>
    %c0_i32_2 = arith.constant 0 : i32
    %9 = arith.cmpi slt, %2, %c0_i32_2 : i32
    %10 = vector.broadcast %9 : i1 to vector<1x256xi1>
    %11 = vector.broadcast %10 : vector<1x256xi1> to vector<1x256xi1>
    %12 = arith.xori %8, %11 : vector<1x256xi1>
    %13 = arith.andi %12, %6 : vector<1x256xi1>
    %14 = vector.broadcast %2 : i32 to vector<1x256xi32>
    %15 = arith.addi %4, %14 : vector<1x256xi32>
    %16 = arith.select %13, %15, %4 : vector<1x256xi1>, vector<1x256xi32>
    %17 = arith.sitofp %16 : vector<1x256xi32> to vector<1x256xf32>
    %cst = arith.constant 1.57079637 : f32
    %18 = vector.broadcast %cst : f32 to vector<1x256xf32>
    %19 = arith.mulf %17, %18 : vector<1x256xf32>
    %c0 = arith.constant 0 : index
    %c0_3 = arith.constant 0 : index
    %20 = vector.load %arg1[%c0, %c0_3] : memref<8x128xf32, #tpu.memory_space<vmem>>, vector<8x128xf32>
    %c0_4 = arith.constant 0 : index
    %c0_5 = arith.constant 0 : index
    %21 = vector.load %arg2[%c0_4, %c0_5] : memref<128x256xf32, #tpu.memory_space<vmem>>, vector<128x256xf32>
    %cst_6 = arith.constant dense<0.000000e+00> : vector<8x256xf32>
    %22 = tpu.matmul %20, %21, %cst_6 {dimension_numbers = #tpu.dot_dimension_numbers<[1], [0], [0], [1], [0, 0, 1, 1], [], []>} : vector<8x128xf32>, vector<128x256xf32>, vector<8x256xf32> -> vector<8x256xf32>
    %c0_7 = arith.constant 0 : index
    %c0_8 = arith.constant 0 : index
    %23 = vector.load %arg3[%c0_7, %c0_8] : memref<1x256xf32, #tpu.memory_space<vmem>>, vector<1x256xf32>
    %24 = vector.broadcast %23 : vector<1x256xf32> to vector<8x256xf32>
    %25 = arith.addf %22, %24 : vector<8x256xf32>
    %26 = vector.broadcast %19 : vector<1x256xf32> to vector<8x256xf32>
    %27 = arith.addf %25, %26 : vector<8x256xf32>
    %28 = math.sin %27 : vector<8x256xf32>
    %c0_9 = arith.constant 0 : index
    %c0_10 = arith.constant 0 : index
    %29 = vector.load %arg4[%c0_9, %c0_10] : memref<256x256xf32, #tpu.memory_space<vmem>>, vector<256x256xf32>
    %cst_11 = arith.constant dense<0.000000e+00> : vector<8x256xf32>
    %30 = tpu.matmul %25, %29, %cst_11 {dimension_numbers = #tpu.dot_dimension_numbers<[1], [0], [0], [1], [0, 0, 1, 1], [], []>} : vector<8x256xf32>, vector<256x256xf32>, vector<8x256xf32> -> vector<8x256xf32>
    %c0_12 = arith.constant 0 : index
    %c0_13 = arith.constant 0 : index
    %31 = vector.load %arg5[%c0_12, %c0_13] : memref<256x256xf32, #tpu.memory_space<vmem>>, vector<256x256xf32>
    %cst_14 = arith.constant dense<0.000000e+00> : vector<8x256xf32>
    %32 = tpu.matmul %28, %31, %cst_14 {dimension_numbers = #tpu.dot_dimension_numbers<[1], [0], [0], [1], [0, 0, 1, 1], [], []>} : vector<8x256xf32>, vector<256x256xf32>, vector<8x256xf32> -> vector<8x256xf32>
    %33 = arith.addf %30, %32 : vector<8x256xf32>
    %c0_15 = arith.constant 0 : index
    %c0_16 = arith.constant 0 : index
    %34 = vector.load %arg6[%c0_15, %c0_16] : memref<1x256xf32, #tpu.memory_space<vmem>>, vector<1x256xf32>
    %35 = vector.broadcast %34 : vector<1x256xf32> to vector<8x256xf32>
    %36 = arith.addf %33, %35 : vector<8x256xf32>
    %37 = vector.broadcast %19 : vector<1x256xf32> to vector<8x256xf32>
    %38 = arith.addf %36, %37 : vector<8x256xf32>
    %39 = math.sin %38 : vector<8x256xf32>
    %c0_17 = arith.constant 0 : index
    %c0_18 = arith.constant 0 : index
    %40 = vector.load %arg7[%c0_17, %c0_18] : memref<256x256xf32, #tpu.memory_space<vmem>>, vector<256x256xf32>
    %cst_19 = arith.constant dense<0.000000e+00> : vector<8x256xf32>
    %41 = tpu.matmul %39, %40, %cst_19 {dimension_numbers = #tpu.dot_dimension_numbers<[1], [0], [0], [1], [0, 0, 1, 1], [], []>} : vector<8x256xf32>, vector<256x256xf32>, vector<8x256xf32> -> vector<8x256xf32>
    %c0_20 = arith.constant 0 : index
    %c0_21 = arith.constant 0 : index
    %42 = vector.load %arg8[%c0_20, %c0_21] : memref<1x256xf32, #tpu.memory_space<vmem>>, vector<1x256xf32>
    %43 = vector.broadcast %42 : vector<1x256xf32> to vector<8x256xf32>
    %44 = arith.addf %41, %43 : vector<8x256xf32>
    %45 = vector.broadcast %19 : vector<1x256xf32> to vector<8x256xf32>
    %46 = arith.addf %44, %45 : vector<8x256xf32>
    %47 = math.sin %46 : vector<8x256xf32>
    %c0_22 = arith.constant 0 : index
    %c0_23 = arith.constant 0 : index
    %48 = vector.load %arg9[%c0_22, %c0_23] : memref<256x128xf32, #tpu.memory_space<vmem>>, vector<256x128xf32>
    %cst_24 = arith.constant dense<0.000000e+00> : vector<8x128xf32>
    %49 = tpu.matmul %47, %48, %cst_24 {dimension_numbers = #tpu.dot_dimension_numbers<[1], [0], [0], [1], [0, 0, 1, 1], [], []>} : vector<8x256xf32>, vector<256x128xf32>, vector<8x128xf32> -> vector<8x128xf32>
    %c0_25 = arith.constant 0 : index
    %c0_26 = arith.constant 0 : index
    %50 = vector.load %arg10[%c0_25, %c0_26] : memref<1x128xf32, #tpu.memory_space<vmem>>, vector<1x128xf32>
    %51 = vector.broadcast %50 : vector<1x128xf32> to vector<8x128xf32>
    %52 = arith.addf %49, %51 : vector<8x128xf32>
    %c0_27 = arith.constant 0 : index
    %c0_28 = arith.constant 0 : index
    %53 = vector.load %arg11[%c0_27, %c0_28] : memref<8x128xf32, #tpu.memory_space<vmem>>, vector<8x128xf32>
    tpu.vector_store %arg11[%c0_27, %c0_28], %52 {strides = array<i32>} : memref<8x128xf32, #tpu.memory_space<vmem>>, vector<8x128xf32>,
    return
  }
  func.func @transform_0(%arg0: i32) -> (i32, i32) {
    %c0_i32 = arith.constant 0 : i32
    %c0_i32_0 = arith.constant 0 : i32
    return %arg0, %c0_i32 : i32, i32
  }
  func.func @transform_1(%arg0: i32) -> (i32, i32) {
    %c0_i32 = arith.constant 0 : i32
    %c0_i32_0 = arith.constant 0 : i32
    %c0_i32_1 = arith.constant 0 : i32
    return %c0_i32, %c0_i32_0 : i32, i32
  }
  func.func @transform_2(%arg0: i32) -> (i32, i32) {
    %c0_i32 = arith.constant 0 : i32
    %c0_i32_0 = arith.constant 0 : i32
    %c0_i32_1 = arith.constant 0 : i32
    return %c0_i32, %c0_i32_0 : i32, i32
  }
  func.func @transform_3(%arg0: i32) -> (i32, i32) {
    %c0_i32 = arith.constant 0 : i32
    %c0_i32_0 = arith.constant 0 : i32
    %c0_i32_1 = arith.constant 0 : i32
    return %c0_i32, %c0_i32_0 : i32, i32
  }
  func.func @transform_4(%arg0: i32) -> (i32, i32) {
    %c0_i32 = arith.constant 0 : i32
    %c0_i32_0 = arith.constant 0 : i32
    %c0_i32_1 = arith.constant 0 : i32
    return %c0_i32, %c0_i32_0 : i32, i32
  }
  func.func @transform_5(%arg0: i32) -> (i32, i32) {
    %c0_i32 = arith.constant 0 : i32
    %c0_i32_0 = arith.constant 0 : i32
    %c0_i32_1 = arith.constant 0 : i32
    return %c0_i32, %c0_i32_0 : i32, i32
  }
  func.func @transform_6(%arg0: i32) -> (i32, i32) {
    %c0_i32 = arith.constant 0 : i32
    %c0_i32_0 = arith.constant 0 : i32
    %c0_i32_1 = arith.constant 0 : i32
    return %c0_i32, %c0_i32_0 : i32, i32
  }
  func.func @transform_7(%arg0: i32) -> (i32, i32) {
    %c0_i32 = arith.constant 0 : i32
    %c0_i32_0 = arith.constant 0 : i32
    %c0_i32_1 = arith.constant 0 : i32
    return %c0_i32, %c0_i32_0 : i32, i32
  }
  func.func @transform_8(%arg0: i32) -> (i32, i32) {
    %c0_i32 = arith.constant 0 : i32
    %c0_i32_0 = arith.constant 0 : i32
    %c0_i32_1 = arith.constant 0 : i32
    return %c0_i32, %c0_i32_0 : i32, i32
  }
  func.func @transform_9(%arg0: i32) -> (i32, i32) {
    %c0_i32 = arith.constant 0 : i32
    %c0_i32_0 = arith.constant 0 : i32
    %c0_i32_1 = arith.constant 0 : i32
    return %c0_i32, %c0_i32_0 : i32, i32
  }
  func.func @transform_10(%arg0: i32) -> (i32, i32) {
    %c0_i32 = arith.constant 0 : i32
    %c0_i32_0 = arith.constant 0 : i32
    return %arg0, %c0_i32 : i32, i32
  }
}

</mosaic_0001>

<llo_original>
// kernel: tpu_custom_call.1
$region0: #{tpu_custom_call.1}
  #allocation0 [shape = 'u32[]', space=smem, size = 0x4, offset = 0x4, fixed_abs, tag = 'smem constant byte address 0x4 - core index']
  #allocation1 [shape = 'u32[72,128]{1,0:T(1,128)}', space=vmem, size = 0x9000, scoped, tag = 'internal scratch']
  %s0 = inlined_call_operand.hbm [shape: f32[16,128], index: 0, kind: input, shape index: {}]
  %s1 = inlined_call_operand.hbm [shape: f32[128,256], index: 1, kind: input, shape index: {}]
  %s2 = inlined_call_operand.hbm [shape: f32[1,256], index: 2, kind: input, shape index: {}]
  %s3 = inlined_call_operand.hbm [shape: f32[256,256], index: 3, kind: input, shape index: {}]
  %s4 = inlined_call_operand.hbm [shape: f32[256,256], index: 4, kind: input, shape index: {}]
  %s5 = inlined_call_operand.vmem [shape: f32[1,256], index: 5, kind: input, shape index: {}]
  %s6 = inlined_call_operand.hbm [shape: f32[256,256], index: 6, kind: input, shape index: {}]
  %s7 = inlined_call_operand.vmem [shape: f32[1,256], index: 7, kind: input, shape index: {}]
  %s8 = inlined_call_operand.hbm [shape: f32[256,128], index: 8, kind: input, shape index: {}]
  %s9 = inlined_call_operand.vmem [shape: f32[1,128], index: 9, kind: input, shape index: {}]
  %s10 = inlined_call_operand.hbm [shape: f32[16,128], index: 10, kind: output, shape index: {}]
  %s11 = sld [smem:[#allocation0]]
  $region101: #{tpu_custom_call.1} parent=0
    _
  %s13 = ssub.s32 1, %s11
  %s14 = scalar_select 0, %s13, %s11
  $region1: #{tpu_custom_call.1} parent=0
    #allocation2 [shape = 'u8[8192]{0}', space=vmem, size = 0x2000, scoped, tag = 'input window, operand 0']
    #allocation3 [shape = 's32[2]{0}', space=sflag, size = 0x8, scoped, tag = 'scoped memory for tpu_custom_call.1']
    #allocation4 [shape = 's32[2]{0}', space=sflag, size = 0x8, scoped, tag = 'scoped memory for tpu_custom_call.1']
    #allocation5 [shape = 'u8[131072]{0}', space=vmem, size = 0x20000, scoped, tag = 'input window, operand 1, single buffered']
    #allocation6 [shape = 's32[1]{0}', space=sflag, size = 0x4, scoped, tag = 'scoped memory for tpu_custom_call.1']
    #allocation7 [shape = 'u8[1024]{0}', space=vmem, size = 0x400, scoped, tag = 'input window, operand 2, single buffered']
    #allocation8 [shape = 'u8[262144]{0}', space=vmem, size = 0x40000, scoped, tag = 'input window, operand 3, single buffered']
    #allocation9 [shape = 's32[1]{0}', space=sflag, size = 0x4, scoped, tag = 'scoped memory for tpu_custom_call.1']
    #allocation10 [shape = 'u8[262144]{0}', space=vmem, size = 0x40000, scoped, tag = 'input window, operand 4, single buffered']
    #allocation11 [shape = 'u8[262144]{0}', space=vmem, size = 0x40000, scoped, tag = 'input window, operand 6, single buffered']
    #allocation12 [shape = 's32[1]{0}', space=sflag, size = 0x4, scoped, tag = 'scoped memory for tpu_custom_call.1']
    #allocation13 [shape = 'u8[131072]{0}', space=vmem, size = 0x20000, scoped, tag = 'input window, operand 8, single buffered']
    #allocation14 [shape = 'u8[8192]{0}', space=vmem, size = 0x2000, scoped, tag = 'output window, operand 0']
    %15 = vsyncpa [#allocation3], 0
    %s16 = scalar_lea.sflag [#allocation3], 1
    %17 = vsyncpa %s16, 0
    %18 = vsyncpa [#allocation6], 0
    %19 = vsyncpa [#allocation9], 0
    %20 = vsyncpa [#allocation12], 0
    %21 = vsyncpa [#allocation4], 0
    %s22 = scalar_lea.sflag [#allocation4], 1
    %23 = vsyncpa %s22, 0
    loop: start=0, step=1, limit=4
    $region2: #{tpu_custom_call.1} parent=1 // loop_pre_header
      _
    $region3: #{tpu_custom_call.1} parent=1 // loop_header
      %s25 = sphi 0, %s29
      %p26 = scmp.ge.s32.totalorder %s25, 4
      %s35 = sphi 0, %s37
      %s38 = sphi 0, %s35
      %s39 = sphi 0, %s38
      %s55 = sphi 0, %s39
      %s59 = sphi 0, %s59
      %s61 = sphi 0, %s59
      %s62 = sphi 0, %s61
      %s76 = sphi 0, %s62
      %s80 = sphi 0, %s80
      %s82 = sphi 0, %s80
      %s83 = sphi 0, %s82
      %s97 = sphi 0, %s83
      %s101 = sphi 0, %s101
      %s103 = sphi 0, %s101
      %s104 = sphi 0, %s103
      %s118 = sphi 0, %s104
      %s122 = sphi 0, %s122
      %s124 = sphi 0, %s122
      %s125 = sphi 0, %s124
      %s139 = sphi 0, %s125
      %s143 = sphi 0, %s143
      %s145 = sphi 0, %s143
      %s146 = sphi 0, %s145
      %s160 = sphi 0, %s146
      %s164 = sphi 0, %s164
      %s166 = sphi 0, %s164
      %s167 = sphi 0, %s166
      %s181 = sphi 0, %s167
      %s185 = sphi 0, %s185
      %s187 = sphi 0, %s185
      %s188 = sphi 0, %s187
      %s202 = sphi 0, %s188
      %s206 = sphi 0, %s206
      %s208 = sphi 0, %s206
      %s209 = sphi 0, %s208
      %s223 = sphi 0, %s209
      %s227 = sphi 0, %s227
      %s229 = sphi 0, %s227
      %s230 = sphi 0, %s229
      %s244 = sphi 0, %s230
      %s250 = sphi 0, %s252
      %s253 = sphi 0, %s250
      %s254 = sphi 0, %s253
      %s270 = sphi 0, %s254
    $region4: #{tpu_custom_call.1} parent=1 // loop_header_branch
      %28 = sbr.rel (%p26) target = $region8
    $region5: #{tpu_custom_call.1} parent=1 // loop_body
      %s30 = ssub.s32 %s25, 1
      %s31 = ssub.s32 %s25, 2
      %s32 = sadd.s32 %s25, 1
      %s33 = ssub.s32 %s25, %s32
      %p34 = scmp.eq.s32.totalorder %s33, 0
      %s36 = sadd.s32 %s35, 1
      %s37 = scalar_select %p34, %s35, %s36
      %p40 = pneg %p34
      %p41 = scmp.eq.s32.totalorder %s25, 1
      %p42 = por %p40, %p41
      %p43 = scmp.ne.s32.totalorder %s35, %s38
      %p44 = scmp.eq.s32.totalorder %s25, 0
      %p45 = por %p43, %p44
      %p46 = scmp.ne.s32.totalorder %s35, %s38
      %p47 = scmp.eq.s32.totalorder %s30, 1
      %p48 = por %p46, %p47
      %p49 = scmp.ne.s32.totalorder %s38, %s39
      %p50 = scmp.eq.s32.totalorder %s30, 0
      %p51 = por %p49, %p50
      %p52 = scmp.ne.s32.totalorder %s38, %s39
      %p53 = scmp.eq.s32.totalorder %s31, 1
      %p54 = por %p52, %p53
      %p56 = scmp.ne.s32.totalorder %s39, %s55
      %p57 = scmp.eq.s32.totalorder %s31, 0
      %p58 = por %p56, %p57
      %s60 = sadd.s32 %s59, 1
      %p63 = scmp.eq.s32.totalorder %s25, 1
      %p64 = scmp.ne.s32.totalorder %s59, %s61
      %p65 = scmp.eq.s32.totalorder %s25, 0
      %p66 = por %p64, %p65
      %p67 = scmp.ne.s32.totalorder %s59, %s61
      %p68 = scmp.eq.s32.totalorder %s30, 1
      %p69 = por %p67, %p68
      %p70 = scmp.ne.s32.totalorder %s61, %s62
      %p71 = scmp.eq.s32.totalorder %s30, 0
      %p72 = por %p70, %p71
      %p73 = scmp.ne.s32.totalorder %s61, %s62
      %p74 = scmp.eq.s32.totalorder %s31, 1
      %p75 = por %p73, %p74
      %p77 = scmp.ne.s32.totalorder %s62, %s76
      %p78 = scmp.eq.s32.totalorder %s31, 0
      %p79 = por %p77, %p78
      %s81 = sadd.s32 %s80, 1
      %p84 = scmp.eq.s32.totalorder %s25, 1
      %p85 = scmp.ne.s32.totalorder %s80, %s82
      %p86 = scmp.eq.s32.totalorder %s25, 0
      %p87 = por %p85, %p86
      %p88 = scmp.ne.s32.totalorder %s80, %s82
      %p89 = scmp.eq.s32.totalorder %s30, 1
      %p90 = por %p88, %p89
      %p91 = scmp.ne.s32.totalorder %s82, %s83
      %p92 = scmp.eq.s32.totalorder %s30, 0
      %p93 = por %p91, %p92
      %p94 = scmp.ne.s32.totalorder %s82, %s83
      %p95 = scmp.eq.s32.totalorder %s31, 1
      %p96 = por %p94, %p95
      %p98 = scmp.ne.s32.totalorder %s83, %s97
      %p99 = scmp.eq.s32.totalorder %s31, 0
      %p100 = por %p98, %p99
      %s102 = sadd.s32 %s101, 1
      %p105 = scmp.eq.s32.totalorder %s25, 1
      %p106 = scmp.ne.s32.totalorder %s101, %s103
      %p107 = scmp.eq.s32.totalorder %s25, 0
      %p108 = por %p106, %p107
      %p109 = scmp.ne.s32.totalorder %s101, %s103
      %p110 = scmp.eq.s32.totalorder %s30, 1
      %p111 = por %p109, %p110
      %p112 = scmp.ne.s32.totalorder %s103, %s104
      %p113 = scmp.eq.s32.totalorder %s30, 0
      %p114 = por %p112, %p113
      %p115 = scmp.ne.s32.totalorder %s103, %s104
      %p116 = scmp.eq.s32.totalorder %s31, 1
      %p117 = por %p115, %p116
      %p119 = scmp.ne.s32.totalorder %s104, %s118
      %p120 = scmp.eq.s32.totalorder %s31, 0
      %p121 = por %p119, %p120
      %s123 = sadd.s32 %s122, 1
      %p126 = scmp.eq.s32.totalorder %s25, 1
      %p127 = scmp.ne.s32.totalorder %s122, %s124
      %p128 = scmp.eq.s32.totalorder %s25, 0
      %p129 = por %p127, %p128
      %p130 = scmp.ne.s32.totalorder %s122, %s124
      %p131 = scmp.eq.s32.totalorder %s30, 1
      %p132 = por %p130, %p131
      %p133 = scmp.ne.s32.totalorder %s124, %s125
      %p134 = scmp.eq.s32.totalorder %s30, 0
      %p135 = por %p133, %p134
      %p136 = scmp.ne.s32.totalorder %s124, %s125
      %p137 = scmp.eq.s32.totalorder %s31, 1
      %p138 = por %p136, %p137
      %p140 = scmp.ne.s32.totalorder %s125, %s139
      %p141 = scmp.eq.s32.totalorder %s31, 0
      %p142 = por %p140, %p141
      %s144 = sadd.s32 %s143, 1
      %p147 = scmp.eq.s32.totalorder %s25, 1
      %p148 = scmp.ne.s32.totalorder %s143, %s145
      %p149 = scmp.eq.s32.totalorder %s25, 0
      %p150 = por %p148, %p149
      %p151 = scmp.ne.s32.totalorder %s143, %s145
      %p152 = scmp.eq.s32.totalorder %s30, 1
      %p153 = por %p151, %p152
      %p154 = scmp.ne.s32.totalorder %s145, %s146
      %p155 = scmp.eq.s32.totalorder %s30, 0
      %p156 = por %p154, %p155
      %p157 = scmp.ne.s32.totalorder %s145, %s146
      %p158 = scmp.eq.s32.totalorder %s31, 1
      %p159 = por %p157, %p158
      %p161 = scmp.ne.s32.totalorder %s146, %s160
      %p162 = scmp.eq.s32.totalorder %s31, 0
      %p163 = por %p161, %p162
      %s165 = sadd.s32 %s164, 1
      %p168 = scmp.eq.s32.totalorder %s25, 1
      %p169 = scmp.ne.s32.totalorder %s164, %s166
      %p170 = scmp.eq.s32.totalorder %s25, 0
      %p171 = por %p169, %p170
      %p172 = scmp.ne.s32.totalorder %s164, %s166
      %p173 = scmp.eq.s32.totalorder %s30, 1
      %p174 = por %p172, %p173
      %p175 = scmp.ne.s32.totalorder %s166, %s167
      %p176 = scmp.eq.s32.totalorder %s30, 0
      %p177 = por %p175, %p176
      %p178 = scmp.ne.s32.totalorder %s166, %s167
      %p179 = scmp.eq.s32.totalorder %s31, 1
      %p180 = por %p178, %p179
      %p182 = scmp.ne.s32.totalorder %s167, %s181
      %p183 = scmp.eq.s32.totalorder %s31, 0
      %p184 = por %p182, %p183
      %s186 = sadd.s32 %s185, 1
      %p189 = scmp.eq.s32.totalorder %s25, 1
      %p190 = scmp.ne.s32.totalorder %s185, %s187
      %p191 = scmp.eq.s32.totalorder %s25, 0
      %p192 = por %p190, %p191
      %p193 = scmp.ne.s32.totalorder %s185, %s187
      %p194 = scmp.eq.s32.totalorder %s30, 1
      %p195 = por %p193, %p194
      %p196 = scmp.ne.s32.totalorder %s187, %s188
      %p197 = scmp.eq.s32.totalorder %s30, 0
      %p198 = por %p196, %p197
      %p199 = scmp.ne.s32.totalorder %s187, %s188
      %p200 = scmp.eq.s32.totalorder %s31, 1
      %p201 = por %p199, %p200
      %p203 = scmp.ne.s32.totalorder %s188, %s202
      %p204 = scmp.eq.s32.totalorder %s31, 0
      %p205 = por %p203, %p204
      %s207 = sadd.s32 %s206, 1
      %p210 = scmp.eq.s32.totalorder %s25, 1
      %p211 = scmp.ne.s32.totalorder %s206, %s208
      %p212 = scmp.eq.s32.totalorder %s25, 0
      %p213 = por %p211, %p212
      %p214 = scmp.ne.s32.totalorder %s206, %s208
      %p215 = scmp.eq.s32.totalorder %s30, 1
      %p216 = por %p214, %p215
      %p217 = scmp.ne.s32.totalorder %s208, %s209
      %p218 = scmp.eq.s32.totalorder %s30, 0
      %p219 = por %p217, %p218
      %p220 = scmp.ne.s32.totalorder %s208, %s209
      %p221 = scmp.eq.s32.totalorder %s31, 1
      %p222 = por %p220, %p221
      %p224 = scmp.ne.s32.totalorder %s209, %s223
      %p225 = scmp.eq.s32.totalorder %s31, 0
      %p226 = por %p224, %p225
      %s228 = sadd.s32 %s227, 1
      %p231 = scmp.eq.s32.totalorder %s25, 1
      %p232 = scmp.ne.s32.totalorder %s227, %s229
      %p233 = scmp.eq.s32.totalorder %s25, 0
      %p234 = por %p232, %p233
      %p235 = scmp.ne.s32.totalorder %s227, %s229
      %p236 = scmp.eq.s32.totalorder %s30, 1
      %p237 = por %p235, %p236
      %p238 = scmp.ne.s32.totalorder %s229, %s230
      %p239 = scmp.eq.s32.totalorder %s30, 0
      %p240 = por %p238, %p239
      %p241 = scmp.ne.s32.totalorder %s229, %s230
      %p242 = scmp.eq.s32.totalorder %s31, 1
      %p243 = por %p241, %p242
      %p245 = scmp.ne.s32.totalorder %s230, %s244
      %p246 = scmp.eq.s32.totalorder %s31, 0
      %p247 = por %p245, %p246
      %s248 = ssub.s32 %s25, %s32
      %p249 = scmp.eq.s32.totalorder %s248, 0
      %s251 = sadd.s32 %s250, 1
      %s252 = scalar_select %p249, %s250, %s251
      %p255 = pneg %p249
      %p256 = scmp.eq.s32.totalorder %s25, 1
      %p257 = por %p255, %p256
      %p258 = scmp.ne.s32.totalorder %s250, %s253
      %p259 = scmp.eq.s32.totalorder %s25, 0
      %p260 = por %p258, %p259
      %p261 = scmp.ne.s32.totalorder %s250, %s253
      %p262 = scmp.eq.s32.totalorder %s30, 1
      %p263 = por %p261, %p262
      %p264 = scmp.ne.s32.totalorder %s253, %s254
      %p265 = scmp.eq.s32.totalorder %s30, 0
      %p266 = por %p264, %p265
      %p267 = scmp.ne.s32.totalorder %s253, %s254
      %p268 = scmp.eq.s32.totalorder %s31, 1
      %p269 = por %p267, %p268
      %p271 = scmp.ne.s32.totalorder %s254, %s270
      %p272 = scmp.eq.s32.totalorder %s31, 0
      %p273 = por %p271, %p272
      %p274 = scmp.le.s32.totalorder 1, %s25
      %p275 = scmp.lt.s32.totalorder %s25, 3
      %p276 = pnand %p274, %p275
      %p277 = pneg %p276
      // Predicated region
      $region9: #{tpu_custom_call.1} parent=5 // pred_check
        _
      $region10: #{tpu_custom_call.1} parent=5 // pred_check_branch
        %279 = sbr.rel (%p276) target = $region12
      $region11: #{tpu_custom_call.1} parent=5 // pred_region
        %s280 = ssub.s32 %s25, 1
        // Predicated region
        $region13: #{tpu_custom_call.1} parent=11 // pred_check
          %p281 = pneg %p72
        $region14: #{tpu_custom_call.1} parent=11 // pred_check_branch
          %283 = sbr.rel (%p281) target = $region16
        $region15: #{tpu_custom_call.1} parent=11 // pred_region
          %285 = vsyncadd [#allocation6], 0
          %s286 = sshll.u32 %s1, 4
          %s287 = int_to_ptr.hbm [resolvable:$true] %s286
          %s288 = sshll.u32 [#allocation5], 4
          %s289 = int_to_ptr.vmem [resolvable:$true] %s288
          %294 = dma.hbm_to_vmem [thread:$0]  %s287, 4096, %s289, [#allocation6], 256, 256, 16
        $region16: #{tpu_custom_call.1} parent=11 // pred_fallthru
          _
        // Predicated region
        $region17: #{tpu_custom_call.1} parent=11 // pred_check
          %p295 = pneg %p93
        $region18: #{tpu_custom_call.1} parent=11 // pred_check_branch
          %297 = sbr.rel (%p295) target = $region20
        $region19: #{tpu_custom_call.1} parent=11 // pred_region
          %299 = vsyncadd [#allocation6], 0
          %s301 = sshll.u32 %s2, 4
          %s302 = int_to_ptr.hbm [resolvable:$true] %s301
          %s303 = sshll.u32 [#allocation7], 4
          %s304 = int_to_ptr.vmem [resolvable:$true] %s303
          %306 = dma.hbm_to_vmem [thread:$0]  %s302, 32, %s304, [#allocation6]
        $region20: #{tpu_custom_call.1} parent=11 // pred_fallthru
          _
        // Predicated region
        $region21: #{tpu_custom_call.1} parent=11 // pred_check
          %p307 = pneg %p114
        $region22: #{tpu_custom_call.1} parent=11 // pred_check_branch
          %309 = sbr.rel (%p307) target = $region24
        $region23: #{tpu_custom_call.1} parent=11 // pred_region
          %311 = vsyncadd [#allocation9], 0
          %s312 = sshll.u32 %s3, 4
          %s313 = int_to_ptr.hbm [resolvable:$true] %s312
          %s314 = sshll.u32 [#allocation8], 4
          %s315 = int_to_ptr.vmem [resolvable:$true] %s314
          %320 = dma.hbm_to_vmem [thread:$0]  %s313, 8192, %s315, [#allocation9], 256, 256, 16
        $region24: #{tpu_custom_call.1} parent=11 // pred_fallthru
          _
        // Predicated region
        $region25: #{tpu_custom_call.1} parent=11 // pred_check
          %p321 = pneg %p135
        $region26: #{tpu_custom_call.1} parent=11 // pred_check_branch
          %323 = sbr.rel (%p321) target = $region28
        $region27: #{tpu_custom_call.1} parent=11 // pred_region
          %325 = vsyncadd [#allocation9], 0
          %s326 = sshll.u32 %s4, 4
          %s327 = int_to_ptr.hbm [resolvable:$true] %s326
          %s328 = sshll.u32 [#allocation10], 4
          %s329 = int_to_ptr.vmem [resolvable:$true] %s328
          %334 = dma.hbm_to_vmem [thread:$0]  %s327, 8192, %s329, [#allocation9], 256, 256, 16
        $region28: #{tpu_custom_call.1} parent=11 // pred_fallthru
          _
        // Predicated region
        $region29: #{tpu_custom_call.1} parent=11 // pred_check
          %p335 = pneg %p156
        $region30: #{tpu_custom_call.1} parent=11 // pred_check_branch
          %337 = sbr.rel (%p335) target = $region32
        $region31: #{tpu_custom_call.1} parent=11 // pred_region
          _
        $region32: #{tpu_custom_call.1} parent=11 // pred_fallthru
          _
        // Predicated region
        $region33: #{tpu_custom_call.1} parent=11 // pred_check
          %p338 = pneg %p177
        $region34: #{tpu_custom_call.1} parent=11 // pred_check_branch
          %340 = sbr.rel (%p338) target = $region36
        $region35: #{tpu_custom_call.1} parent=11 // pred_region
          %342 = vsyncadd [#allocation12], 0
          %s343 = sshll.u32 %s6, 4
          %s344 = int_to_ptr.hbm [resolvable:$true] %s343
          %s345 = sshll.u32 [#allocation11], 4
          %s346 = int_to_ptr.vmem [resolvable:$true] %s345
          %351 = dma.hbm_to_vmem [thread:$0]  %s344, 8192, %s346, [#allocation12], 256, 256, 16
        $region36: #{tpu_custom_call.1} parent=11 // pred_fallthru
          _
        // Predicated region
        $region37: #{tpu_custom_call.1} parent=11 // pred_check
          %p352 = pneg %p198
        $region38: #{tpu_custom_call.1} parent=11 // pred_check_branch
          %354 = sbr.rel (%p352) target = $region40
        $region39: #{tpu_custom_call.1} parent=11 // pred_region
          _
        $region40: #{tpu_custom_call.1} parent=11 // pred_fallthru
          _
        // Predicated region
        $region41: #{tpu_custom_call.1} parent=11 // pred_check
          %p355 = pneg %p219
        $region42: #{tpu_custom_call.1} parent=11 // pred_check_branch
          %357 = sbr.rel (%p355) target = $region44
        $region43: #{tpu_custom_call.1} parent=11 // pred_region
          %359 = vsyncadd [#allocation12], 0
          %s360 = sshll.u32 %s8, 4
          %s361 = int_to_ptr.hbm [resolvable:$true] %s360
          %s362 = sshll.u32 [#allocation13], 4
          %s363 = int_to_ptr.vmem [resolvable:$true] %s362
          %368 = dma.hbm_to_vmem [thread:$0]  %s361, 4096, %s363, [#allocation12], 128, 128, 8
        $region44: #{tpu_custom_call.1} parent=11 // pred_fallthru
          _
        // Predicated region
        $region45: #{tpu_custom_call.1} parent=11 // pred_check
          %p369 = pneg %p240
        $region46: #{tpu_custom_call.1} parent=11 // pred_check_branch
          %371 = sbr.rel (%p369) target = $region48
        $region47: #{tpu_custom_call.1} parent=11 // pred_region
          _
        $region48: #{tpu_custom_call.1} parent=11 // pred_fallthru
          _
      $region12: #{tpu_custom_call.1} parent=5 // pred_fallthru
        _
      %p372 = scmp.lt.s32.totalorder %s25, 2
      // Predicated region
      $region49: #{tpu_custom_call.1} parent=5 // pred_check
        %p373 = pneg %p372
      $region50: #{tpu_custom_call.1} parent=5 // pred_check_branch
        %375 = sbr.rel (%p373) target = $region52
      $region51: #{tpu_custom_call.1} parent=5 // pred_region
        // Predicated region
        $region53: #{tpu_custom_call.1} parent=51 // pred_check
          %p376 = pneg %p45
        $region54: #{tpu_custom_call.1} parent=51 // pred_check_branch
          %378 = sbr.rel (%p376) target = $region56
        $region55: #{tpu_custom_call.1} parent=51 // pred_region
          %s379 = sand.u32 %s35, 1
          %s380 = scalar_lea.sflag [#allocation3], %s379
          %s381 = sand.u32 %s35, 1
          %s382 = smul.addr %s381, 8
          %s383 = scalar_lea.vmem [#allocation2], %s382
          %385 = vsyncadd %s380, 0
          %s386 = smul.addr %s25, 8
          %s387 = scalar_lea.hbm %s0, %s386
          %s389 = sshll.u32 %s387, 4
          %s390 = int_to_ptr.hbm [resolvable:$true] %s389
          %s391 = sshll.u32 %s383, 4
          %s392 = int_to_ptr.vmem [resolvable:$true] %s391
          %394 = dma.hbm_to_vmem [thread:$0]  %s390, 128, %s392, %s380
        $region56: #{tpu_custom_call.1} parent=51 // pred_fallthru
          _
      $region52: #{tpu_custom_call.1} parent=5 // pred_fallthru
        _
      %p395 = scmp.le.s32.totalorder 1, %s25
      %p396 = scmp.lt.s32.totalorder %s25, 3
      %p397 = pnand %p395, %p396
      %p398 = pneg %p397
      // Predicated region
      $region57: #{tpu_custom_call.1} parent=5 // pred_check
        _
      $region58: #{tpu_custom_call.1} parent=5 // pred_check_branch
        %400 = sbr.rel (%p397) target = $region60
      $region59: #{tpu_custom_call.1} parent=5 // pred_region
        %s401 = ssub.s32 %s25, 1
        %s402 = sand.u32 %s38, 1
        %s403 = scalar_lea.sflag [#allocation3], %s402
        %s404 = sand.u32 %s38, 1
        %s405 = smul.addr %s404, 8
        %s406 = scalar_lea.vmem [#allocation2], %s405
        // Predicated region
        $region61: #{tpu_custom_call.1} parent=59 // pred_check
          %p407 = pneg %p51
        $region62: #{tpu_custom_call.1} parent=59 // pred_check_branch
          %409 = sbr.rel (%p407) target = $region64
        $region63: #{tpu_custom_call.1} parent=59 // pred_region
          %411 = dma.done %s403, 128
        $region64: #{tpu_custom_call.1} parent=59 // pred_fallthru
          _
        // Predicated region
        $region65: #{tpu_custom_call.1} parent=59 // pred_check
          %p412 = pneg %p72
        $region66: #{tpu_custom_call.1} parent=59 // pred_check_branch
          %414 = sbr.rel (%p412) target = $region68
        $region67: #{tpu_custom_call.1} parent=59 // pred_region
          %416 = dma.done [#allocation6], 4096
        $region68: #{tpu_custom_call.1} parent=59 // pred_fallthru
          _
        // Predicated region
        $region69: #{tpu_custom_call.1} parent=59 // pred_check
          %p417 = pneg %p93
        $region70: #{tpu_custom_call.1} parent=59 // pred_check_branch
          %419 = sbr.rel (%p417) target = $region72
        $region71: #{tpu_custom_call.1} parent=59 // pred_region
          %421 = dma.done [#allocation6], 32
        $region72: #{tpu_custom_call.1} parent=59 // pred_fallthru
          _
        // Predicated region
        $region73: #{tpu_custom_call.1} parent=59 // pred_check
          %p422 = pneg %p114
        $region74: #{tpu_custom_call.1} parent=59 // pred_check_branch
          %424 = sbr.rel (%p422) target = $region76
        $region75: #{tpu_custom_call.1} parent=59 // pred_region
          %426 = dma.done [#allocation9], 8192
        $region76: #{tpu_custom_call.1} parent=59 // pred_fallthru
          _
        // Predicated region
        $region77: #{tpu_custom_call.1} parent=59 // pred_check
          %p427 = pneg %p135
        $region78: #{tpu_custom_call.1} parent=59 // pred_check_branch
          %429 = sbr.rel (%p427) target = $region80
        $region79: #{tpu_custom_call.1} parent=59 // pred_region
          %431 = dma.done [#allocation9], 8192
        $region80: #{tpu_custom_call.1} parent=59 // pred_fallthru
          _
        // Predicated region
        $region81: #{tpu_custom_call.1} parent=59 // pred_check
          %p432 = pneg %p177
        $region82: #{tpu_custom_call.1} parent=59 // pred_check_branch
          %434 = sbr.rel (%p432) target = $region84
        $region83: #{tpu_custom_call.1} parent=59 // pred_region
          %436 = dma.done [#allocation12], 8192
        $region84: #{tpu_custom_call.1} parent=59 // pred_fallthru
          _
        // Predicated region
        $region85: #{tpu_custom_call.1} parent=59 // pred_check
          %p437 = pneg %p219
        $region86: #{tpu_custom_call.1} parent=59 // pred_check_branch
          %439 = sbr.rel (%p437) target = $region88
        $region87: #{tpu_custom_call.1} parent=59 // pred_region
          %441 = dma.done [#allocation12], 4096
        $region88: #{tpu_custom_call.1} parent=59 // pred_fallthru
          _
        %s442 = sand.u32 %s38, 1
        %s443 = scalar_lea.sflag [#allocation3], %s442
        %s444 = sand.u32 %s38, 1
        %s445 = smul.addr %s444, 8
        %s446 = scalar_lea.vmem [#allocation2], %s445
        %p447 = pneg %p51
        %p448 = pneg %p48
        %p449 = pneg %p72
        %p450 = pneg %p69
        %p451 = pneg %p93
        %p452 = pneg %p90
        %p453 = pneg %p114
        %p454 = pneg %p111
        %p455 = pneg %p135
        %p456 = pneg %p132
        %p457 = pneg %p156
        %p458 = pneg %p153
        %p459 = pneg %p177
        %p460 = pneg %p174
        %p461 = pneg %p198
        %p462 = pneg %p195
        %p463 = pneg %p219
        %p464 = pneg %p216
        %p465 = pneg %p240
        %p466 = pneg %p237
        %p467 = pneg %p266
        %p468 = pneg %p263
        %s469 = sand.u32 %s253, 1
        %s470 = scalar_lea.sflag [#allocation4], %s469
        %s471 = sand.u32 %s253, 1
        %s472 = smul.addr %s471, 8
        %s473 = scalar_lea.vmem [#allocation14], %s472
        %v474 = vlaneseq
        %v475 = vand.u32 %v474, 127
        %v476 = vadd.s32 %v475, 128
        %vm477 = vcmp.lt.s32.totalorder %v475, 0
        %v478 = vsub.s32 0, %v475
        %v479 = vsel %vm477, %v478, %v475
        %v480 = vshrl.u32 %v479, 1
        %v481 = vand.u32 %v479, 1
        %v482 = vsub.s32 0, %v481
        %v483 = vsel %vm477, %v482, %v481
        %vm484 = vcmp.lt.s32.totalorder %v476, 0
        %v485 = vsub.s32 0, %v476
        %v486 = vsel %vm484, %v485, %v476
        %v487 = vshrl.u32 %v486, 1
        %v488 = vand.u32 %v486, 1
        %v489 = vsub.s32 0, %v488
        %v490 = vsel %vm484, %v489, %v488
        %vm491 = vcmp.ne.s32.totalorder %v483, 0
        %vm492 = vcmp.ne.s32.totalorder %v490, 0
        %vm493 = vcmp.lt.s32.totalorder %v483, 0
        %vm494 = vcmp.lt.s32.totalorder %v490, 0
        %vm495 = vmand %vm493, %vm491
        %vm496 = vmand %vm494, %vm492
        %v497 = vadd.s32 %v483, 2
        %v498 = vadd.s32 %v490, 2
        %v499 = vsel %vm495, %v497, %v483
        %v500 = vsel %vm496, %v498, %v490
        %v501 = vcvt.s32.f32 %v499
        %v502 = vcvt.s32.f32 %v500
        %v503 = vmul.f32 %v501, 1.5707964
        %v504 = vmul.f32 %v502, 1.5707964
        %v505 = vld [vmem:[%s406] sm:$0xff]
        %v506 = vld [vmem:[#allocation5] sm:$0xff]
        %v507 = vld [vmem:[#allocation5 + $0x8] sm:$0xff]
        %v508 = vld [vmem:[#allocation5 + $0x10] sm:$0xff]
        %v509 = vld [vmem:[#allocation5 + $0x18] sm:$0xff]
        %v510 = vld [vmem:[#allocation5 + $0x20] sm:$0xff]
        %v511 = vld [vmem:[#allocation5 + $0x28] sm:$0xff]
        %v512 = vld [vmem:[#allocation5 + $0x30] sm:$0xff]
        %v513 = vld [vmem:[#allocation5 + $0x38] sm:$0xff]
        %v514 = vld [vmem:[#allocation5 + $0x40] sm:$0xff]
        %v515 = vld [vmem:[#allocation5 + $0x48] sm:$0xff]
        %v516 = vld [vmem:[#allocation5 + $0x50] sm:$0xff]
        %v517 = vld [vmem:[#allocation5 + $0x58] sm:$0xff]
        %v518 = vld [vmem:[#allocation5 + $0x60] sm:$0xff]
        %v519 = vld [vmem:[#allocation5 + $0x68] sm:$0xff]
        %v520 = vld [vmem:[#allocation5 + $0x70] sm:$0xff]
        %v521 = vld [vmem:[#allocation5 + $0x78] sm:$0xff]
        %v522 = vld [vmem:[#allocation5 + $0x80] sm:$0xff]
        %v523 = vld [vmem:[#allocation5 + $0x88] sm:$0xff]
        %v524 = vld [vmem:[#allocation5 + $0x90] sm:$0xff]
        %v525 = vld [vmem:[#allocation5 + $0x98] sm:$0xff]
        %v526 = vld [vmem:[#allocation5 + $0xa0] sm:$0xff]
        %v527 = vld [vmem:[#allocation5 + $0xa8] sm:$0xff]
        %v528 = vld [vmem:[#allocation5 + $0xb0] sm:$0xff]
        %v529 = vld [vmem:[#allocation5 + $0xb8] sm:$0xff]
        %v530 = vld [vmem:[#allocation5 + $0xc0] sm:$0xff]
        %v531 = vld [vmem:[#allocation5 + $0xc8] sm:$0xff]
        %v532 = vld [vmem:[#allocation5 + $0xd0] sm:$0xff]
        %v533 = vld [vmem:[#allocation5 + $0xd8] sm:$0xff]
        %v534 = vld [vmem:[#allocation5 + $0xe0] sm:$0xff]
        %v535 = vld [vmem:[#allocation5 + $0xe8] sm:$0xff]
        %v536 = vld [vmem:[#allocation5 + $0xf0] sm:$0xff]
        %v537 = vld [vmem:[#allocation5 + $0xf8] sm:$0xff]
        %v538 = vld [vmem:[#allocation7] sm:$0x3]
        %v540 = vperm.slane %v538, 0
        %v541 = vperm.slane %v538, 1
        %544 = vmatpush.msra.mxu0 %v536
        %545 = vmatpush.msra.mxu0 %v534
        %546 = vmatpush.msra.mxu0 %v532
        %547 = vmatpush.msra.mxu0 %v530
        %548 = vmatpush.msra.mxu0 %v528
        %549 = vmatpush.msra.mxu0 %v526
        %550 = vmatpush.msra.mxu0 %v524
        %551 = vmatpush.msra.mxu0 %v522
        %552 = vmatpush.msra.mxu0 %v520
        %553 = vmatpush.msra.mxu0 %v518
        %554 = vmatpush.msra.mxu0 %v516
        %555 = vmatpush.msra.mxu0 %v514
        %556 = vmatpush.msra.mxu0 %v512
        %557 = vmatpush.msra.mxu0 %v510
        %558 = vmatpush.msra.mxu0 %v508
        %559 = vmatpush.msra.mxu0 %v506
        %560 = vmatmul.f32.gmra.mxu0 %v505
        %v561 = vpop.f32.mrf.mxu0
        %v562 = vadd.f32 %v540, %v561
        %563 = vdwg.mxu0
        %564 = vmatpush.msra.mxu0 %v537
        %565 = vmatpush.msra.mxu0 %v535
        %566 = vmatpush.msra.mxu0 %v533
        %567 = vmatpush.msra.mxu0 %v531
        %568 = vmatpush.msra.mxu0 %v529
        %569 = vmatpush.msra.mxu0 %v527
        %570 = vmatpush.msra.mxu0 %v525
        %571 = vmatpush.msra.mxu0 %v523
        %572 = vmatpush.msra.mxu0 %v521
        %573 = vmatpush.msra.mxu0 %v519
        %574 = vmatpush.msra.mxu0 %v517
        %575 = vmatpush.msra.mxu0 %v515
        %576 = vmatpush.msra.mxu0 %v513
        %577 = vmatpush.msra.mxu0 %v511
        %578 = vmatpush.msra.mxu0 %v509
        %579 = vmatpush.msra.mxu0 %v507
        %580 = vmatmul.f32.gmra.mxu0 %v505
        %v581 = vpop.f32.mrf.mxu0
        %v582 = vadd.f32 %v541, %v581
        %583 = vdwg.mxu0
        %v584 = vadd.f32 %v562, %v503
        %v585 = vadd.f32 %v582, %v504
        %v586 = vand.u32 2147483647, %v584
        %vm587 = vcmp.le.f32.partialorder %v586, 0.7853982
        %vm588 = vcmp.lt.s32.totalorder %v584, 0
        %v589 = vand.u32 %v584, 2139095040
        %v590 = vshrl.u32 %v589, 23
        %v591 = vsub.s32 %v590, 127
        %v592 = vand.u32 2147483647, %v584
        %v593 = vand.u32 %v592, 8388607
        %v594 = vor.u32 %v593, 8388608
        %v595 = vsub.s32 0, %v594
        %v596 = vadd.s32 %v591, 1
        %vm597 = vcmp.gt.s32.totalorder %v596, 0
        %v598 = vsel %vm597, %v596, 0
        %v599 = vshrl.u32 %v598, 5
        %v600 = vand.u32 %v598, 31
        %v601 = vsub.s32 32, %v600
        %v602 = vshrl.u32 683565275, %v601
        %v603 = vshll.u32 683565275, %v600
        %v604 = vshrl.u32 2475754826, %v601
        %v605 = vor.u32 %v603, %v604
        %v606 = vshll.u32 2475754826, %v600
        %v607 = vshrl.u32 2131351028, %v601
        %v608 = vor.u32 %v606, %v607
        %v609 = vshll.u32 2131351028, %v600
        %v610 = vshrl.u32 2102212464, %v601
        %v611 = vor.u32 %v609, %v610
        %v612 = vshll.u32 2102212464, %v600
        %v613 = vshrl.u32 920167782, %v601
        %v614 = vor.u32 %v612, %v613
        %v615 = vshll.u32 920167782, %v600
        %v616 = vshrl.u32 1326507024, %v601
        %v617 = vor.u32 %v615, %v616
        %vm618 = vcmp.lt.s32.totalorder %v599, 1
        %vm619 = vcmp.lt.s32.totalorder %v599, 2
        %vm620 = vcmp.lt.s32.totalorder %v599, 3
        %vm621 = vcmp.lt.s32.totalorder %v599, 4
        %v622 = vsel %vm618, %v602, %v605
        %v623 = vsel %vm621, %v611, 2102212464
        %v624 = vsel %vm620, %v608, %v623
        %v625 = vsel %vm619, %v622, %v624
        %v626 = vsel %vm618, %v605, %v608
        %v627 = vsel %vm621, %v614, 920167782
        %v628 = vsel %vm620, %v611, %v627
        %v629 = vsel %vm619, %v626, %v628
        %v630 = vsel %vm618, %v608, %v611
        %v631 = vsel %vm621, %v617, 1326507024
        %v632 = vsel %vm620, %v614, %v631
        %v633 = vsel %vm619, %v630, %v632
        %v634 = vshll.u32 %v594, 8
        %v635 = vand.u32 %v634, 65535
        %v636 = vshrl.u32 %v634, 16
        %v637 = vand.u32 %v633, 65535
        %v638 = vshrl.u32 %v633, 16
        %v639 = vmul.u32 %v635, %v637
        %v640 = vmul.u32 %v635, %v638
        %v641 = vmul.u32 %v636, %v637
        %v642 = vmul.u32 %v636, %v638
        %v643 = vshll.u32 %v640, 16
        %v644 = vshrl.u32 %v640, 16
        %v645 = vshll.u32 %v641, 16
        %v646 = vshrl.u32 %v641, 16
        %vm647 = vc.u32 %v639, %v643
        %v648 = vsel %vm647, 1, 0
        %v649 = vadd.s32 %v639, %v643
        %v650 = vadd.s32 %v642, %v648
        %vm651 = vc.u32 %v649, %v645
        %v652 = vsel %vm651, 1, 0
        %v653 = vadd.s32 %v649, %v645
        %v654 = vadd.s32 %v650, %v652
        %v655 = vadd.s32 %v654, %v644
        %v656 = vadd.s32 %v655, %v646
        %v657 = vand.u32 %v634, 65535
        %v658 = vshrl.u32 %v634, 16
        %v659 = vand.u32 %v629, 65535
        %v660 = vshrl.u32 %v629, 16
        %v661 = vmul.u32 %v657, %v659
        %v662 = vmul.u32 %v657, %v660
        %v663 = vmul.u32 %v658, %v659
        %v664 = vmul.u32 %v658, %v660
        %v665 = vshll.u32 %v662, 16
        %v666 = vshrl.u32 %v662, 16
        %v667 = vshll.u32 %v663, 16
        %v668 = vshrl.u32 %v663, 16
        %vm669 = vc.u32 %v661, %v665
        %v670 = vsel %vm669, 1, 0
        %v671 = vadd.s32 %v661, %v665
        %v672 = vadd.s32 %v664, %v670
        %vm673 = vc.u32 %v671, %v667
        %v674 = vsel %vm673, 1, 0
        %v675 = vadd.s32 %v671, %v667
        %v676 = vadd.s32 %v672, %v674
        %v677 = vadd.s32 %v676, %v666
        %v678 = vadd.s32 %v677, %v668
        %v679 = vmul.u32 %v634, %v625
        %v680 = vadd.s32 %v656, %v675
        %vm681 = vc.u32 %v656, %v675
        %v682 = vadd.s32 %v678, 1
        %v683 = vsel %vm681, %v682, %v678
        %v684 = vadd.s32 %v679, %v683
        %v685 = vadd.s32 %v684, 536870912
        %v686 = vshrl.u32 %v685, 30
        %v687 = vshll.u32 %v686, 30
        %v688 = vsub.s32 %v684, %v687
        %vm689 = vcmp.lt.s32.totalorder %v688, 0
        %v690 = vsub.s32 0, %v688
        %v691 = vsel %vm689, %v690, %v688
        %v692 = vclz %v691
        %v693 = vsub.s32 %v692, 2
        %vm694 = vcmp.gt.s32.totalorder 0, %v693
        %v695 = vsel %vm694, 0, %v693
        %v696 = vsub.s32 32, %v695
        %v697 = vshll.u32 %v688, %v695
        %v698 = vshrl.u32 %v680, %v696
        %v699 = vor.u32 %v697, %v698
        %v700 = vsub.s32 4294967266, %v695
        %v701 = vadd.s32 %v700, 127
        %v702 = vshll.u32 %v701, 23
        %v703 = vor.u32 4788187, %v702
        %v704 = vand.u32 2147483647, %v703
        %v706 = vcvt.s32.f32 %v699
        %v707 = vmul.f32 %v706, %v704
        %v708 = vxor.u32 %v707, 2147483648
        %v709 = vsel %vm588, %v708, %v707
        %v710 = vsub.s32 4, %v686
        %v711 = vsel %vm588, %v710, %v686
        %v712 = vsel %vm587, %v584, %v709
        %v713 = vsel %vm587, 0, %v711
        %v714 = vmul.f32 %v712, %v712
        %v715 = vmul.f32 %v714, -0.001358992
        %v716 = vadd.f32 %v715, 0.041655596
        %v717 = vmul.f32 %v714, %v716
        %v718 = vadd.f32 %v717, -0.4999988
        %v719 = vmul.f32 %v714, %v718
        %v720 = vadd.f32 1.0, %v719
        %v721 = vmul.f32 %v712, %v712
        %v722 = vmul.f32 %v721, -0.00019511016
        %v723 = vadd.f32 %v722, 0.008332121
        %v724 = vmul.f32 %v721, %v723
        %v725 = vadd.f32 %v724, -0.16666654
        %v726 = vmul.f32 %v721, %v725
        %v727 = vadd.f32 %v726, 1.0
        %v728 = vmul.f32 %v727, %v712
        %vm729 = vweird.f32 %v584
        %v730 = vadd.s32 %v713, 3
        %v731 = vand.u32 %v730, 3
        %vm732 = vcmp.lt.s32.totalorder %v731, 2
        %vm733 = vcmp.eq.s32.totalorder %v731, 0
        %v734 = vxor.u32 %v728, 2147483648
        %v735 = vsel %vm733, %v720, %v734
        %vm736 = vcmp.eq.s32.totalorder %v731, 2
        %v737 = vxor.u32 %v720, 2147483648
        %v738 = vsel %vm736, %v737, %v728
        %v739 = vsel %vm732, %v735, %v738
        %v740 = vsel %vm729, nan, %v739
        %v741 = vand.u32 2147483647, %v585
        %vm742 = vcmp.le.f32.partialorder %v741, 0.7853982
        %vm743 = vcmp.lt.s32.totalorder %v585, 0
        %v744 = vand.u32 %v585, 2139095040
        %v745 = vshrl.u32 %v744, 23
        %v746 = vsub.s32 %v745, 127
        %v747 = vand.u32 2147483647, %v585
        %v748 = vand.u32 %v747, 8388607
        %v749 = vor.u32 %v748, 8388608
        %v750 = vsub.s32 0, %v749
        %v751 = vadd.s32 %v746, 1
        %vm752 = vcmp.gt.s32.totalorder %v751, 0
        %v753 = vsel %vm752, %v751, 0
        %v754 = vshrl.u32 %v753, 5
        %v755 = vand.u32 %v753, 31
        %v756 = vsub.s32 32, %v755
        %v757 = vshrl.u32 683565275, %v756
        %v758 = vshll.u32 683565275, %v755
        %v759 = vshrl.u32 2475754826, %v756
        %v760 = vor.u32 %v758, %v759
        %v761 = vshll.u32 2475754826, %v755
        %v762 = vshrl.u32 2131351028, %v756
        %v763 = vor.u32 %v761, %v762
        %v764 = vshll.u32 2131351028, %v755
        %v765 = vshrl.u32 2102212464, %v756
        %v766 = vor.u32 %v764, %v765
        %v767 = vshll.u32 2102212464, %v755
        %v768 = vshrl.u32 920167782, %v756
        %v769 = vor.u32 %v767, %v768
        %v770 = vshll.u32 920167782, %v755
        %v771 = vshrl.u32 1326507024, %v756
        %v772 = vor.u32 %v770, %v771
        %vm773 = vcmp.lt.s32.totalorder %v754, 1
        %vm774 = vcmp.lt.s32.totalorder %v754, 2
        %vm775 = vcmp.lt.s32.totalorder %v754, 3
        %vm776 = vcmp.lt.s32.totalorder %v754, 4
        %v777 = vsel %vm773, %v757, %v760
        %v778 = vsel %vm776, %v766, 2102212464
        %v779 = vsel %vm775, %v763, %v778
        %v780 = vsel %vm774, %v777, %v779
        %v781 = vsel %vm773, %v760, %v763
        %v782 = vsel %vm776, %v769, 920167782
        %v783 = vsel %vm775, %v766, %v782
        %v784 = vsel %vm774, %v781, %v783
        %v785 = vsel %vm773, %v763, %v766
        %v786 = vsel %vm776, %v772, 1326507024
        %v787 = vsel %vm775, %v769, %v786
        %v788 = vsel %vm774, %v785, %v787
        %v789 = vshll.u32 %v749, 8
        %v790 = vand.u32 %v789, 65535
        %v791 = vshrl.u32 %v789, 16
        %v792 = vand.u32 %v788, 65535
        %v793 = vshrl.u32 %v788, 16
        %v794 = vmul.u32 %v790, %v792
        %v795 = vmul.u32 %v790, %v793
        %v796 = vmul.u32 %v791, %v792
        %v797 = vmul.u32 %v791, %v793
        %v798 = vshll.u32 %v795, 16
        %v799 = vshrl.u32 %v795, 16
        %v800 = vshll.u32 %v796, 16
        %v801 = vshrl.u32 %v796, 16
        %vm802 = vc.u32 %v794, %v798
        %v803 = vsel %vm802, 1, 0
        %v804 = vadd.s32 %v794, %v798
        %v805 = vadd.s32 %v797, %v803
        %vm806 = vc.u32 %v804, %v800
        %v807 = vsel %vm806, 1, 0
        %v808 = vadd.s32 %v804, %v800
        %v809 = vadd.s32 %v805, %v807
        %v810 = vadd.s32 %v809, %v799
        %v811 = vadd.s32 %v810, %v801
        %v812 = vand.u32 %v789, 65535
        %v813 = vshrl.u32 %v789, 16
        %v814 = vand.u32 %v784, 65535
        %v815 = vshrl.u32 %v784, 16
        %v816 = vmul.u32 %v812, %v814
        %v817 = vmul.u32 %v812, %v815
        %v818 = vmul.u32 %v813, %v814
        %v819 = vmul.u32 %v813, %v815
        %v820 = vshll.u32 %v817, 16
        %v821 = vshrl.u32 %v817, 16
        %v822 = vshll.u32 %v818, 16
        %v823 = vshrl.u32 %v818, 16
        %vm824 = vc.u32 %v816, %v820
        %v825 = vsel %vm824, 1, 0
        %v826 = vadd.s32 %v816, %v820
        %v827 = vadd.s32 %v819, %v825
        %vm828 = vc.u32 %v826, %v822
        %v829 = vsel %vm828, 1, 0
        %v830 = vadd.s32 %v826, %v822
        %v831 = vadd.s32 %v827, %v829
        %v832 = vadd.s32 %v831, %v821
        %v833 = vadd.s32 %v832, %v823
        %v834 = vmul.u32 %v789, %v780
        %v835 = vadd.s32 %v811, %v830
        %vm836 = vc.u32 %v811, %v830
        %v837 = vadd.s32 %v833, 1
        %v838 = vsel %vm836, %v837, %v833
        %v839 = vadd.s32 %v834, %v838
        %v840 = vadd.s32 %v839, 536870912
        %v841 = vshrl.u32 %v840, 30
        %v842 = vshll.u32 %v841, 30
        %v843 = vsub.s32 %v839, %v842
        %vm844 = vcmp.lt.s32.totalorder %v843, 0
        %v845 = vsub.s32 0, %v843
        %v846 = vsel %vm844, %v845, %v843
        %v847 = vclz %v846
        %v848 = vsub.s32 %v847, 2
        %vm849 = vcmp.gt.s32.totalorder 0, %v848
        %v850 = vsel %vm849, 0, %v848
        %v851 = vsub.s32 32, %v850
        %v852 = vshll.u32 %v843, %v850
        %v853 = vshrl.u32 %v835, %v851
        %v854 = vor.u32 %v852, %v853
        %v855 = vsub.s32 4294967266, %v850
        %v856 = vadd.s32 %v855, 127
        %v857 = vshll.u32 %v856, 23
        %v858 = vor.u32 4788187, %v857
        %v859 = vand.u32 2147483647, %v858
        %v861 = vcvt.s32.f32 %v854
        %v862 = vmul.f32 %v861, %v859
        %v863 = vxor.u32 %v862, 2147483648
        %v864 = vsel %vm743, %v863, %v862
        %v865 = vsub.s32 4, %v841
        %v866 = vsel %vm743, %v865, %v841
        %v867 = vsel %vm742, %v585, %v864
        %v868 = vsel %vm742, 0, %v866
        %v869 = vmul.f32 %v867, %v867
        %v870 = vmul.f32 %v869, -0.001358992
        %v871 = vadd.f32 %v870, 0.041655596
        %v872 = vmul.f32 %v869, %v871
        %v873 = vadd.f32 %v872, -0.4999988
        %v874 = vmul.f32 %v869, %v873
        %v875 = vadd.f32 1.0, %v874
        %v876 = vmul.f32 %v867, %v867
        %v877 = vmul.f32 %v876, -0.00019511016
        %v878 = vadd.f32 %v877, 0.008332121
        %v879 = vmul.f32 %v876, %v878
        %v880 = vadd.f32 %v879, -0.16666654
        %v881 = vmul.f32 %v876, %v880
        %v882 = vadd.f32 %v881, 1.0
        %v883 = vmul.f32 %v882, %v867
        %vm884 = vweird.f32 %v585
        %v885 = vadd.s32 %v868, 3
        %v886 = vand.u32 %v885, 3
        %vm887 = vcmp.lt.s32.totalorder %v886, 2
        %vm888 = vcmp.eq.s32.totalorder %v886, 0
        %v889 = vxor.u32 %v883, 2147483648
        %v890 = vsel %vm888, %v875, %v889
        %vm891 = vcmp.eq.s32.totalorder %v886, 2
        %v892 = vxor.u32 %v875, 2147483648
        %v893 = vsel %vm891, %v892, %v883
        %v894 = vsel %vm887, %v890, %v893
        %v895 = vsel %vm884, nan, %v894
        %v896 = vld [vmem:[#allocation8] sm:$0xff]
        %v897 = vld [vmem:[#allocation8 + $0x8] sm:$0xff]
        %v898 = vld [vmem:[#allocation8 + $0x10] sm:$0xff]
        %v899 = vld [vmem:[#allocation8 + $0x18] sm:$0xff]
        %v900 = vld [vmem:[#allocation8 + $0x20] sm:$0xff]
        %v901 = vld [vmem:[#allocation8 + $0x28] sm:$0xff]
        %v902 = vld [vmem:[#allocation8 + $0x30] sm:$0xff]
        %v903 = vld [vmem:[#allocation8 + $0x38] sm:$0xff]
        %v904 = vld [vmem:[#allocation8 + $0x40] sm:$0xff]
        %v905 = vld [vmem:[#allocation8 + $0x48] sm:$0xff]
        %v906 = vld [vmem:[#allocation8 + $0x50] sm:$0xff]
        %v907 = vld [vmem:[#allocation8 + $0x58] sm:$0xff]
        %v908 = vld [vmem:[#allocation8 + $0x60] sm:$0xff]
        %v909 = vld [vmem:[#allocation8 + $0x68] sm:$0xff]
        %v910 = vld [vmem:[#allocation8 + $0x70] sm:$0xff]
        %v911 = vld [vmem:[#allocation8 + $0x78] sm:$0xff]
        %v912 = vld [vmem:[#allocation8 + $0x80] sm:$0xff]
        %v913 = vld [vmem:[#allocation8 + $0x88] sm:$0xff]
        %v914 = vld [vmem:[#allocation8 + $0x90] sm:$0xff]
        %v915 = vld [vmem:[#allocation8 + $0x98] sm:$0xff]
        %v916 = vld [vmem:[#allocation8 + $0xa0] sm:$0xff]
        %v917 = vld [vmem:[#allocation8 + $0xa8] sm:$0xff]
        %v918 = vld [vmem:[#allocation8 + $0xb0] sm:$0xff]
        %v919 = vld [vmem:[#allocation8 + $0xb8] sm:$0xff]
        %v920 = vld [vmem:[#allocation8 + $0xc0] sm:$0xff]
        %v921 = vld [vmem:[#allocation8 + $0xc8] sm:$0xff]
        %v922 = vld [vmem:[#allocation8 + $0xd0] sm:$0xff]
        %v923 = vld [vmem:[#allocation8 + $0xd8] sm:$0xff]
        %v924 = vld [vmem:[#allocation8 + $0xe0] sm:$0xff]
        %v925 = vld [vmem:[#allocation8 + $0xe8] sm:$0xff]
        %v926 = vld [vmem:[#allocation8 + $0xf0] sm:$0xff]
        %v927 = vld [vmem:[#allocation8 + $0xf8] sm:$0xff]
        %v928 = vld [vmem:[#allocation8 + $0x100] sm:$0xff]
        %v929 = vld [vmem:[#allocation8 + $0x108] sm:$0xff]
        %v930 = vld [vmem:[#allocation8 + $0x110] sm:$0xff]
        %v931 = vld [vmem:[#allocation8 + $0x118] sm:$0xff]
        %v932 = vld [vmem:[#allocation8 + $0x120] sm:$0xff]
        %v933 = vld [vmem:[#allocation8 + $0x128] sm:$0xff]
        %v934 = vld [vmem:[#allocation8 + $0x130] sm:$0xff]
        %v935 = vld [vmem:[#allocation8 + $0x138] sm:$0xff]
        %v936 = vld [vmem:[#allocation8 + $0x140] sm:$0xff]
        %v937 = vld [vmem:[#allocation8 + $0x148] sm:$0xff]
        %v938 = vld [vmem:[#allocation8 + $0x150] sm:$0xff]
        %v939 = vld [vmem:[#allocation8 + $0x158] sm:$0xff]
        %v940 = vld [vmem:[#allocation8 + $0x160] sm:$0xff]
        %v941 = vld [vmem:[#allocation8 + $0x168] sm:$0xff]
        %v942 = vld [vmem:[#allocation8 + $0x170] sm:$0xff]
        %v943 = vld [vmem:[#allocation8 + $0x178] sm:$0xff]
        %v944 = vld [vmem:[#allocation8 + $0x180] sm:$0xff]
        %v945 = vld [vmem:[#allocation8 + $0x188] sm:$0xff]
        %v946 = vld [vmem:[#allocation8 + $0x190] sm:$0xff]
        %v947 = vld [vmem:[#allocation8 + $0x198] sm:$0xff]
        %v948 = vld [vmem:[#allocation8 + $0x1a0] sm:$0xff]
        %v949 = vld [vmem:[#allocation8 + $0x1a8] sm:$0xff]
        %v950 = vld [vmem:[#allocation8 + $0x1b0] sm:$0xff]
        %v951 = vld [vmem:[#allocation8 + $0x1b8] sm:$0xff]
        %v952 = vld [vmem:[#allocation8 + $0x1c0] sm:$0xff]
        %v953 = vld [vmem:[#allocation8 + $0x1c8] sm:$0xff]
        %v954 = vld [vmem:[#allocation8 + $0x1d0] sm:$0xff]
        %v955 = vld [vmem:[#allocation8 + $0x1d8] sm:$0xff]
        %v956 = vld [vmem:[#allocation8 + $0x1e0] sm:$0xff]
        %v957 = vld [vmem:[#allocation8 + $0x1e8] sm:$0xff]
        %v958 = vld [vmem:[#allocation8 + $0x1f0] sm:$0xff]
        %v959 = vld [vmem:[#allocation8 + $0x1f8] sm:$0xff]
        %v960 = vld [vmem:[#allocation10] sm:$0xff]
        %v961 = vld [vmem:[#allocation10 + $0x8] sm:$0xff]
        %v962 = vld [vmem:[#allocation10 + $0x10] sm:$0xff]
        %v963 = vld [vmem:[#allocation10 + $0x18] sm:$0xff]
        %v964 = vld [vmem:[#allocation10 + $0x20] sm:$0xff]
        %v965 = vld [vmem:[#allocation10 + $0x28] sm:$0xff]
        %v966 = vld [vmem:[#allocation10 + $0x30] sm:$0xff]
        %v967 = vld [vmem:[#allocation10 + $0x38] sm:$0xff]
        %v968 = vld [vmem:[#allocation10 + $0x40] sm:$0xff]
        %v969 = vld [vmem:[#allocation10 + $0x48] sm:$0xff]
        %v970 = vld [vmem:[#allocation10 + $0x50] sm:$0xff]
        %v971 = vld [vmem:[#allocation10 + $0x58] sm:$0xff]
        %v972 = vld [vmem:[#allocation10 + $0x60] sm:$0xff]
        %v973 = vld [vmem:[#allocation10 + $0x68] sm:$0xff]
        %v974 = vld [vmem:[#allocation10 + $0x70] sm:$0xff]
        %v975 = vld [vmem:[#allocation10 + $0x78] sm:$0xff]
        %v976 = vld [vmem:[#allocation10 + $0x80] sm:$0xff]
        %v977 = vld [vmem:[#allocation10 + $0x88] sm:$0xff]
        %v978 = vld [vmem:[#allocation10 + $0x90] sm:$0xff]
        %v979 = vld [vmem:[#allocation10 + $0x98] sm:$0xff]
        %v980 = vld [vmem:[#allocation10 + $0xa0] sm:$0xff]
        %v981 = vld [vmem:[#allocation10 + $0xa8] sm:$0xff]
        %v982 = vld [vmem:[#allocation10 + $0xb0] sm:$0xff]
        %v983 = vld [vmem:[#allocation10 + $0xb8] sm:$0xff]
        %v984 = vld [vmem:[#allocation10 + $0xc0] sm:$0xff]
        %v985 = vld [vmem:[#allocation10 + $0xc8] sm:$0xff]
        %v986 = vld [vmem:[#allocation10 + $0xd0] sm:$0xff]
        %v987 = vld [vmem:[#allocation10 + $0xd8] sm:$0xff]
        %v988 = vld [vmem:[#allocation10 + $0xe0] sm:$0xff]
        %v989 = vld [vmem:[#allocation10 + $0xe8] sm:$0xff]
        %v990 = vld [vmem:[#allocation10 + $0xf0] sm:$0xff]
        %v991 = vld [vmem:[#allocation10 + $0xf8] sm:$0xff]
        %v992 = vld [vmem:[#allocation10 + $0x100] sm:$0xff]
        %v993 = vld [vmem:[#allocation10 + $0x108] sm:$0xff]
        %v994 = vld [vmem:[#allocation10 + $0x110] sm:$0xff]
        %v995 = vld [vmem:[#allocation10 + $0x118] sm:$0xff]
        %v996 = vld [vmem:[#allocation10 + $0x120] sm:$0xff]
        %v997 = vld [vmem:[#allocation10 + $0x128] sm:$0xff]
        %v998 = vld [vmem:[#allocation10 + $0x130] sm:$0xff]
        %v999 = vld [vmem:[#allocation10 + $0x138] sm:$0xff]
        %v1000 = vld [vmem:[#allocation10 + $0x140] sm:$0xff]
        %v1001 = vld [vmem:[#allocation10 + $0x148] sm:$0xff]
        %v1002 = vld [vmem:[#allocation10 + $0x150] sm:$0xff]
        %v1003 = vld [vmem:[#allocation10 + $0x158] sm:$0xff]
        %v1004 = vld [vmem:[#allocation10 + $0x160] sm:$0xff]
        %v1005 = vld [vmem:[#allocation10 + $0x168] sm:$0xff]
        %v1006 = vld [vmem:[#allocation10 + $0x170] sm:$0xff]
        %v1007 = vld [vmem:[#allocation10 + $0x178] sm:$0xff]
        %v1008 = vld [vmem:[#allocation10 + $0x180] sm:$0xff]
        %v1009 = vld [vmem:[#allocation10 + $0x188] sm:$0xff]
        %v1010 = vld [vmem:[#allocation10 + $0x190] sm:$0xff]
        %v1011 = vld [vmem:[#allocation10 + $0x198] sm:$0xff]
        %v1012 = vld [vmem:[#allocation10 + $0x1a0] sm:$0xff]
        %v1013 = vld [vmem:[#allocation10 + $0x1a8] sm:$0xff]
        %v1014 = vld [vmem:[#allocation10 + $0x1b0] sm:$0xff]
        %v1015 = vld [vmem:[#allocation10 + $0x1b8] sm:$0xff]
        %v1016 = vld [vmem:[#allocation10 + $0x1c0] sm:$0xff]
        %v1017 = vld [vmem:[#allocation10 + $0x1c8] sm:$0xff]
        %v1018 = vld [vmem:[#allocation10 + $0x1d0] sm:$0xff]
        %v1019 = vld [vmem:[#allocation10 + $0x1d8] sm:$0xff]
        %v1020 = vld [vmem:[#allocation10 + $0x1e0] sm:$0xff]
        %v1021 = vld [vmem:[#allocation10 + $0x1e8] sm:$0xff]
        %v1022 = vld [vmem:[#allocation10 + $0x1f0] sm:$0xff]
        %v1023 = vld [vmem:[#allocation10 + $0x1f8] sm:$0xff]
        %1024 = vmatpush.msra.mxu0 %v990
        %1025 = vmatpush.msra.mxu0 %v988
        %1026 = vmatpush.msra.mxu0 %v986
        %1027 = vmatpush.msra.mxu0 %v984
        %1028 = vmatpush.msra.mxu0 %v982
        %1029 = vmatpush.msra.mxu0 %v980
        %1030 = vmatpush.msra.mxu0 %v978
        %1031 = vmatpush.msra.mxu0 %v976
        %1032 = vmatpush.msra.mxu0 %v974
        %1033 = vmatpush.msra.mxu0 %v972
        %1034 = vmatpush.msra.mxu0 %v970
        %1035 = vmatpush.msra.mxu0 %v968
        %1036 = vmatpush.msra.mxu0 %v966
        %1037 = vmatpush.msra.mxu0 %v964
        %1038 = vmatpush.msra.mxu0 %v962
        %1039 = vmatpush.msra.mxu0 %v960
        %1040 = vmatmul.f32.gmra.mxu0 %v740
        %v1041 = vpop.f32.mrf.mxu0
        %v1042 = vadd.f32 0.0, %v1041
        %1043 = vdwg.mxu0
        %1044 = vmatpush.msra.mxu0 %v1022
        %1045 = vmatpush.msra.mxu0 %v1020
        %1046 = vmatpush.msra.mxu0 %v1018
        %1047 = vmatpush.msra.mxu0 %v1016
        %1048 = vmatpush.msra.mxu0 %v1014
        %1049 = vmatpush.msra.mxu0 %v1012
        %1050 = vmatpush.msra.mxu0 %v1010
        %1051 = vmatpush.msra.mxu0 %v1008
        %1052 = vmatpush.msra.mxu0 %v1006
        %1053 = vmatpush.msra.mxu0 %v1004
        %1054 = vmatpush.msra.mxu0 %v1002
        %1055 = vmatpush.msra.mxu0 %v1000
        %1056 = vmatpush.msra.mxu0 %v998
        %1057 = vmatpush.msra.mxu0 %v996
        %1058 = vmatpush.msra.mxu0 %v994
        %1059 = vmatpush.msra.mxu0 %v992
        %1060 = vmatmul.f32.gmra.mxu0 %v895
        %v1061 = vpop.f32.mrf.mxu0
        %v1062 = vadd.f32 %v1042, %v1061
        %1063 = vdwg.mxu0
        %1064 = vmatpush.msra.mxu0 %v991
        %1065 = vmatpush.msra.mxu0 %v989
        %1066 = vmatpush.msra.mxu0 %v987
        %1067 = vmatpush.msra.mxu0 %v985
        %1068 = vmatpush.msra.mxu0 %v983
        %1069 = vmatpush.msra.mxu0 %v981
        %1070 = vmatpush.msra.mxu0 %v979
        %1071 = vmatpush.msra.mxu0 %v977
        %1072 = vmatpush.msra.mxu0 %v975
        %1073 = vmatpush.msra.mxu0 %v973
        %1074 = vmatpush.msra.mxu0 %v971
        %1075 = vmatpush.msra.mxu0 %v969
        %1076 = vmatpush.msra.mxu0 %v967
        %1077 = vmatpush.msra.mxu0 %v965
        %1078 = vmatpush.msra.mxu0 %v963
        %1079 = vmatpush.msra.mxu0 %v961
        %1080 = vmatmul.f32.gmra.mxu0 %v740
        %v1081 = vpop.f32.mrf.mxu0
        %v1082 = vadd.f32 0.0, %v1081
        %1083 = vdwg.mxu0
        %1084 = vmatpush.msra.mxu0 %v1023
        %1085 = vmatpush.msra.mxu0 %v1021
        %1086 = vmatpush.msra.mxu0 %v1019
        %1087 = vmatpush.msra.mxu0 %v1017
        %1088 = vmatpush.msra.mxu0 %v1015
        %1089 = vmatpush.msra.mxu0 %v1013
        %1090 = vmatpush.msra.mxu0 %v1011
        %1091 = vmatpush.msra.mxu0 %v1009
        %1092 = vmatpush.msra.mxu0 %v1007
        %1093 = vmatpush.msra.mxu0 %v1005
        %1094 = vmatpush.msra.mxu0 %v1003
        %1095 = vmatpush.msra.mxu0 %v1001
        %1096 = vmatpush.msra.mxu0 %v999
        %1097 = vmatpush.msra.mxu0 %v997
        %1098 = vmatpush.msra.mxu0 %v995
        %1099 = vmatpush.msra.mxu0 %v993
        %1100 = vmatmul.f32.gmra.mxu0 %v895
        %v1101 = vpop.f32.mrf.mxu0
        %v1102 = vadd.f32 %v1082, %v1101
        %1103 = vdwg.mxu0
        %1104 = vmatpush.msra.mxu0 %v926
        %1105 = vmatpush.msra.mxu0 %v924
        %1106 = vmatpush.msra.mxu0 %v922
        %1107 = vmatpush.msra.mxu0 %v920
        %1108 = vmatpush.msra.mxu0 %v918
        %1109 = vmatpush.msra.mxu0 %v916
        %1110 = vmatpush.msra.mxu0 %v914
        %1111 = vmatpush.msra.mxu0 %v912
        %1112 = vmatpush.msra.mxu0 %v910
        %1113 = vmatpush.msra.mxu0 %v908
        %1114 = vmatpush.msra.mxu0 %v906
        %1115 = vmatpush.msra.mxu0 %v904
        %1116 = vmatpush.msra.mxu0 %v902
        %1117 = vmatpush.msra.mxu0 %v900
        %1118 = vmatpush.msra.mxu0 %v898
        %1119 = vmatpush.msra.mxu0 %v896
        %1120 = vmatmul.f32.gmra.mxu0 %v562
        %v1121 = vpop.f32.mrf.mxu0
        %v1122 = vadd.f32 %v1062, %v1121
        %1123 = vdwg.mxu0
        %1124 = vmatpush.msra.mxu0 %v958
        %1125 = vmatpush.msra.mxu0 %v956
        %1126 = vmatpush.msra.mxu0 %v954
        %1127 = vmatpush.msra.mxu0 %v952
        %1128 = vmatpush.msra.mxu0 %v950
        %1129 = vmatpush.msra.mxu0 %v948
        %1130 = vmatpush.msra.mxu0 %v946
        %1131 = vmatpush.msra.mxu0 %v944
        %1132 = vmatpush.msra.mxu0 %v942
        %1133 = vmatpush.msra.mxu0 %v940
        %1134 = vmatpush.msra.mxu0 %v938
        %1135 = vmatpush.msra.mxu0 %v936
        %1136 = vmatpush.msra.mxu0 %v934
        %1137 = vmatpush.msra.mxu0 %v932
        %1138 = vmatpush.msra.mxu0 %v930
        %1139 = vmatpush.msra.mxu0 %v928
        %1140 = vmatmul.f32.gmra.mxu0 %v582
        %v1141 = vpop.f32.mrf.mxu0
        %v1142 = vadd.f32 %v1122, %v1141
        %1143 = vdwg.mxu0
        %1144 = vmatpush.msra.mxu0 %v927
        %1145 = vmatpush.msra.mxu0 %v925
        %1146 = vmatpush.msra.mxu0 %v923
        %1147 = vmatpush.msra.mxu0 %v921
        %1148 = vmatpush.msra.mxu0 %v919
        %1149 = vmatpush.msra.mxu0 %v917
        %1150 = vmatpush.msra.mxu0 %v915
        %1151 = vmatpush.msra.mxu0 %v913
        %1152 = vmatpush.msra.mxu0 %v911
        %1153 = vmatpush.msra.mxu0 %v909
        %1154 = vmatpush.msra.mxu0 %v907
        %1155 = vmatpush.msra.mxu0 %v905
        %1156 = vmatpush.msra.mxu0 %v903
        %1157 = vmatpush.msra.mxu0 %v901
        %1158 = vmatpush.msra.mxu0 %v899
        %1159 = vmatpush.msra.mxu0 %v897
        %1160 = vmatmul.f32.gmra.mxu0 %v562
        %v1161 = vpop.f32.mrf.mxu0
        %v1162 = vadd.f32 %v1102, %v1161
        %1163 = vdwg.mxu0
        %1164 = vmatpush.msra.mxu0 %v959
        %1165 = vmatpush.msra.mxu0 %v957
        %1166 = vmatpush.msra.mxu0 %v955
        %1167 = vmatpush.msra.mxu0 %v953
        %1168 = vmatpush.msra.mxu0 %v951
        %1169 = vmatpush.msra.mxu0 %v949
        %1170 = vmatpush.msra.mxu0 %v947
        %1171 = vmatpush.msra.mxu0 %v945
        %1172 = vmatpush.msra.mxu0 %v943
        %1173 = vmatpush.msra.mxu0 %v941
        %1174 = vmatpush.msra.mxu0 %v939
        %1175 = vmatpush.msra.mxu0 %v937
        %1176 = vmatpush.msra.mxu0 %v935
        %1177 = vmatpush.msra.mxu0 %v933
        %1178 = vmatpush.msra.mxu0 %v931
        %1179 = vmatpush.msra.mxu0 %v929
        %1180 = vmatmul.f32.gmra.mxu0 %v582
        %v1181 = vpop.f32.mrf.mxu0
        %v1182 = vadd.f32 %v1162, %v1181
        %1183 = vdwg.mxu0
        %v1184 = vld [vmem:[%s5] sm:$0x3]
        %v1186 = vperm.slane %v1184, 0
        %v1187 = vperm.slane %v1184, 1
        %v1190 = vadd.f32 %v1142, %v1186
        %v1191 = vadd.f32 %v1182, %v1187
        %v1192 = vadd.f32 %v1190, %v503
        %v1193 = vadd.f32 %v1191, %v504
        %v1194 = vand.u32 2147483647, %v1192
        %vm1195 = vcmp.le.f32.partialorder %v1194, 0.7853982
        %vm1196 = vcmp.lt.s32.totalorder %v1192, 0
        %v1197 = vand.u32 %v1192, 2139095040
        %v1198 = vshrl.u32 %v1197, 23
        %v1199 = vsub.s32 %v1198, 127
        %v1200 = vand.u32 2147483647, %v1192
        %v1201 = vand.u32 %v1200, 8388607
        %v1202 = vor.u32 %v1201, 8388608
        %v1203 = vsub.s32 0, %v1202
        %v1204 = vadd.s32 %v1199, 1
        %vm1205 = vcmp.gt.s32.totalorder %v1204, 0
        %v1206 = vsel %vm1205, %v1204, 0
        %v1207 = vshrl.u32 %v1206, 5
        %v1208 = vand.u32 %v1206, 31
        %v1209 = vsub.s32 32, %v1208
        %v1210 = vshrl.u32 683565275, %v1209
        %v1211 = vshll.u32 683565275, %v1208
        %v1212 = vshrl.u32 2475754826, %v1209
        %v1213 = vor.u32 %v1211, %v1212
        %v1214 = vshll.u32 2475754826, %v1208
        %v1215 = vshrl.u32 2131351028, %v1209
        %v1216 = vor.u32 %v1214, %v1215
        %v1217 = vshll.u32 2131351028, %v1208
        %v1218 = vshrl.u32 2102212464, %v1209
        %v1219 = vor.u32 %v1217, %v1218
        %v1220 = vshll.u32 2102212464, %v1208
        %v1221 = vshrl.u32 920167782, %v1209
        %v1222 = vor.u32 %v1220, %v1221
        %v1223 = vshll.u32 920167782, %v1208
        %v1224 = vshrl.u32 1326507024, %v1209
        %v1225 = vor.u32 %v1223, %v1224
        %vm1226 = vcmp.lt.s32.totalorder %v1207, 1
        %vm1227 = vcmp.lt.s32.totalorder %v1207, 2
        %vm1228 = vcmp.lt.s32.totalorder %v1207, 3
        %vm1229 = vcmp.lt.s32.totalorder %v1207, 4
        %v1230 = vsel %vm1226, %v1210, %v1213
        %v1231 = vsel %vm1229, %v1219, 2102212464
        %v1232 = vsel %vm1228, %v1216, %v1231
        %v1233 = vsel %vm1227, %v1230, %v1232
        %v1234 = vsel %vm1226, %v1213, %v1216
        %v1235 = vsel %vm1229, %v1222, 920167782
        %v1236 = vsel %vm1228, %v1219, %v1235
        %v1237 = vsel %vm1227, %v1234, %v1236
        %v1238 = vsel %vm1226, %v1216, %v1219
        %v1239 = vsel %vm1229, %v1225, 1326507024
        %v1240 = vsel %vm1228, %v1222, %v1239
        %v1241 = vsel %vm1227, %v1238, %v1240
        %v1242 = vshll.u32 %v1202, 8
        %v1243 = vand.u32 %v1242, 65535
        %v1244 = vshrl.u32 %v1242, 16
        %v1245 = vand.u32 %v1241, 65535
        %v1246 = vshrl.u32 %v1241, 16
        %v1247 = vmul.u32 %v1243, %v1245
        %v1248 = vmul.u32 %v1243, %v1246
        %v1249 = vmul.u32 %v1244, %v1245
        %v1250 = vmul.u32 %v1244, %v1246
        %v1251 = vshll.u32 %v1248, 16
        %v1252 = vshrl.u32 %v1248, 16
        %v1253 = vshll.u32 %v1249, 16
        %v1254 = vshrl.u32 %v1249, 16
        %vm1255 = vc.u32 %v1247, %v1251
        %v1256 = vsel %vm1255, 1, 0
        %v1257 = vadd.s32 %v1247, %v1251
        %v1258 = vadd.s32 %v1250, %v1256
        %vm1259 = vc.u32 %v1257, %v1253
        %v1260 = vsel %vm1259, 1, 0
        %v1261 = vadd.s32 %v1257, %v1253
        %v1262 = vadd.s32 %v1258, %v1260
        %v1263 = vadd.s32 %v1262, %v1252
        %v1264 = vadd.s32 %v1263, %v1254
        %v1265 = vand.u32 %v1242, 65535
        %v1266 = vshrl.u32 %v1242, 16
        %v1267 = vand.u32 %v1237, 65535
        %v1268 = vshrl.u32 %v1237, 16
        %v1269 = vmul.u32 %v1265, %v1267
        %v1270 = vmul.u32 %v1265, %v1268
        %v1271 = vmul.u32 %v1266, %v1267
        %v1272 = vmul.u32 %v1266, %v1268
        %v1273 = vshll.u32 %v1270, 16
        %v1274 = vshrl.u32 %v1270, 16
        %v1275 = vshll.u32 %v1271, 16
        %v1276 = vshrl.u32 %v1271, 16
        %vm1277 = vc.u32 %v1269, %v1273
        %v1278 = vsel %vm1277, 1, 0
        %v1279 = vadd.s32 %v1269, %v1273
        %v1280 = vadd.s32 %v1272, %v1278
        %vm1281 = vc.u32 %v1279, %v1275
        %v1282 = vsel %vm1281, 1, 0
        %v1283 = vadd.s32 %v1279, %v1275
        %v1284 = vadd.s32 %v1280, %v1282
        %v1285 = vadd.s32 %v1284, %v1274
        %v1286 = vadd.s32 %v1285, %v1276
        %v1287 = vmul.u32 %v1242, %v1233
        %v1288 = vadd.s32 %v1264, %v1283
        %vm1289 = vc.u32 %v1264, %v1283
        %v1290 = vadd.s32 %v1286, 1
        %v1291 = vsel %vm1289, %v1290, %v1286
        %v1292 = vadd.s32 %v1287, %v1291
        %v1293 = vadd.s32 %v1292, 536870912
        %v1294 = vshrl.u32 %v1293, 30
        %v1295 = vshll.u32 %v1294, 30
        %v1296 = vsub.s32 %v1292, %v1295
        %vm1297 = vcmp.lt.s32.totalorder %v1296, 0
        %v1298 = vsub.s32 0, %v1296
        %v1299 = vsel %vm1297, %v1298, %v1296
        %v1300 = vclz %v1299
        %v1301 = vsub.s32 %v1300, 2
        %vm1302 = vcmp.gt.s32.totalorder 0, %v1301
        %v1303 = vsel %vm1302, 0, %v1301
        %v1304 = vsub.s32 32, %v1303
        %v1305 = vshll.u32 %v1296, %v1303
        %v1306 = vshrl.u32 %v1288, %v1304
        %v1307 = vor.u32 %v1305, %v1306
        %v1308 = vsub.s32 4294967266, %v1303
        %v1309 = vadd.s32 %v1308, 127
        %v1310 = vshll.u32 %v1309, 23
        %v1311 = vor.u32 4788187, %v1310
        %v1312 = vand.u32 2147483647, %v1311
        %v1314 = vcvt.s32.f32 %v1307
        %v1315 = vmul.f32 %v1314, %v1312
        %v1316 = vxor.u32 %v1315, 2147483648
        %v1317 = vsel %vm1196, %v1316, %v1315
        %v1318 = vsub.s32 4, %v1294
        %v1319 = vsel %vm1196, %v1318, %v1294
        %v1320 = vsel %vm1195, %v1192, %v1317
        %v1321 = vsel %vm1195, 0, %v1319
        %v1322 = vmul.f32 %v1320, %v1320
        %v1323 = vmul.f32 %v1322, -0.001358992
        %v1324 = vadd.f32 %v1323, 0.041655596
        %v1325 = vmul.f32 %v1322, %v1324
        %v1326 = vadd.f32 %v1325, -0.4999988
        %v1327 = vmul.f32 %v1322, %v1326
        %v1328 = vadd.f32 1.0, %v1327
        %v1329 = vmul.f32 %v1320, %v1320
        %v1330 = vmul.f32 %v1329, -0.00019511016
        %v1331 = vadd.f32 %v1330, 0.008332121
        %v1332 = vmul.f32 %v1329, %v1331
        %v1333 = vadd.f32 %v1332, -0.16666654
        %v1334 = vmul.f32 %v1329, %v1333
        %v1335 = vadd.f32 %v1334, 1.0
        %v1336 = vmul.f32 %v1335, %v1320
        %vm1337 = vweird.f32 %v1192
        %v1338 = vadd.s32 %v1321, 3
        %v1339 = vand.u32 %v1338, 3
        %vm1340 = vcmp.lt.s32.totalorder %v1339, 2
        %vm1341 = vcmp.eq.s32.totalorder %v1339, 0
        %v1342 = vxor.u32 %v1336, 2147483648
        %v1343 = vsel %vm1341, %v1328, %v1342
        %vm1344 = vcmp.eq.s32.totalorder %v1339, 2
        %v1345 = vxor.u32 %v1328, 2147483648
        %v1346 = vsel %vm1344, %v1345, %v1336
        %v1347 = vsel %vm1340, %v1343, %v1346
        %v1348 = vsel %vm1337, nan, %v1347
        %v1349 = vand.u32 2147483647, %v1193
        %vm1350 = vcmp.le.f32.partialorder %v1349, 0.7853982
        %vm1351 = vcmp.lt.s32.totalorder %v1193, 0
        %v1352 = vand.u32 %v1193, 2139095040
        %v1353 = vshrl.u32 %v1352, 23
        %v1354 = vsub.s32 %v1353, 127
        %v1355 = vand.u32 2147483647, %v1193
        %v1356 = vand.u32 %v1355, 8388607
        %v1357 = vor.u32 %v1356, 8388608
        %v1358 = vsub.s32 0, %v1357
        %v1359 = vadd.s32 %v1354, 1
        %vm1360 = vcmp.gt.s32.totalorder %v1359, 0
        %v1361 = vsel %vm1360, %v1359, 0
        %v1362 = vshrl.u32 %v1361, 5
        %v1363 = vand.u32 %v1361, 31
        %v1364 = vsub.s32 32, %v1363
        %v1365 = vshrl.u32 683565275, %v1364
        %v1366 = vshll.u32 683565275, %v1363
        %v1367 = vshrl.u32 2475754826, %v1364
        %v1368 = vor.u32 %v1366, %v1367
        %v1369 = vshll.u32 2475754826, %v1363
        %v1370 = vshrl.u32 2131351028, %v1364
        %v1371 = vor.u32 %v1369, %v1370
        %v1372 = vshll.u32 2131351028, %v1363
        %v1373 = vshrl.u32 2102212464, %v1364
        %v1374 = vor.u32 %v1372, %v1373
        %v1375 = vshll.u32 2102212464, %v1363
        %v1376 = vshrl.u32 920167782, %v1364
        %v1377 = vor.u32 %v1375, %v1376
        %v1378 = vshll.u32 920167782, %v1363
        %v1379 = vshrl.u32 1326507024, %v1364
        %v1380 = vor.u32 %v1378, %v1379
        %vm1381 = vcmp.lt.s32.totalorder %v1362, 1
        %vm1382 = vcmp.lt.s32.totalorder %v1362, 2
        %vm1383 = vcmp.lt.s32.totalorder %v1362, 3
        %vm1384 = vcmp.lt.s32.totalorder %v1362, 4
        %v1385 = vsel %vm1381, %v1365, %v1368
        %v1386 = vsel %vm1384, %v1374, 2102212464
        %v1387 = vsel %vm1383, %v1371, %v1386
        %v1388 = vsel %vm1382, %v1385, %v1387
        %v1389 = vsel %vm1381, %v1368, %v1371
        %v1390 = vsel %vm1384, %v1377, 920167782
        %v1391 = vsel %vm1383, %v1374, %v1390
        %v1392 = vsel %vm1382, %v1389, %v1391
        %v1393 = vsel %vm1381, %v1371, %v1374
        %v1394 = vsel %vm1384, %v1380, 1326507024
        %v1395 = vsel %vm1383, %v1377, %v1394
        %v1396 = vsel %vm1382, %v1393, %v1395
        %v1397 = vshll.u32 %v1357, 8
        %v1398 = vand.u32 %v1397, 65535
        %v1399 = vshrl.u32 %v1397, 16
        %v1400 = vand.u32 %v1396, 65535
        %v1401 = vshrl.u32 %v1396, 16
        %v1402 = vmul.u32 %v1398, %v1400
        %v1403 = vmul.u32 %v1398, %v1401
        %v1404 = vmul.u32 %v1399, %v1400
        %v1405 = vmul.u32 %v1399, %v1401
        %v1406 = vshll.u32 %v1403, 16
        %v1407 = vshrl.u32 %v1403, 16
        %v1408 = vshll.u32 %v1404, 16
        %v1409 = vshrl.u32 %v1404, 16
        %vm1410 = vc.u32 %v1402, %v1406
        %v1411 = vsel %vm1410, 1, 0
        %v1412 = vadd.s32 %v1402, %v1406
        %v1413 = vadd.s32 %v1405, %v1411
        %vm1414 = vc.u32 %v1412, %v1408
        %v1415 = vsel %vm1414, 1, 0
        %v1416 = vadd.s32 %v1412, %v1408
        %v1417 = vadd.s32 %v1413, %v1415
        %v1418 = vadd.s32 %v1417, %v1407
        %v1419 = vadd.s32 %v1418, %v1409
        %v1420 = vand.u32 %v1397, 65535
        %v1421 = vshrl.u32 %v1397, 16
        %v1422 = vand.u32 %v1392, 65535
        %v1423 = vshrl.u32 %v1392, 16
        %v1424 = vmul.u32 %v1420, %v1422
        %v1425 = vmul.u32 %v1420, %v1423
        %v1426 = vmul.u32 %v1421, %v1422
        %v1427 = vmul.u32 %v1421, %v1423
        %v1428 = vshll.u32 %v1425, 16
        %v1429 = vshrl.u32 %v1425, 16
        %v1430 = vshll.u32 %v1426, 16
        %v1431 = vshrl.u32 %v1426, 16
        %vm1432 = vc.u32 %v1424, %v1428
        %v1433 = vsel %vm1432, 1, 0
        %v1434 = vadd.s32 %v1424, %v1428
        %v1435 = vadd.s32 %v1427, %v1433
        %vm1436 = vc.u32 %v1434, %v1430
        %v1437 = vsel %vm1436, 1, 0
        %v1438 = vadd.s32 %v1434, %v1430
        %v1439 = vadd.s32 %v1435, %v1437
        %v1440 = vadd.s32 %v1439, %v1429
        %v1441 = vadd.s32 %v1440, %v1431
        %v1442 = vmul.u32 %v1397, %v1388
        %v1443 = vadd.s32 %v1419, %v1438
        %vm1444 = vc.u32 %v1419, %v1438
        %v1445 = vadd.s32 %v1441, 1
        %v1446 = vsel %vm1444, %v1445, %v1441
        %v1447 = vadd.s32 %v1442, %v1446
        %v1448 = vadd.s32 %v1447, 536870912
        %v1449 = vshrl.u32 %v1448, 30
        %v1450 = vshll.u32 %v1449, 30
        %v1451 = vsub.s32 %v1447, %v1450
        %vm1452 = vcmp.lt.s32.totalorder %v1451, 0
        %v1453 = vsub.s32 0, %v1451
        %v1454 = vsel %vm1452, %v1453, %v1451
        %v1455 = vclz %v1454
        %v1456 = vsub.s32 %v1455, 2
        %vm1457 = vcmp.gt.s32.totalorder 0, %v1456
        %v1458 = vsel %vm1457, 0, %v1456
        %v1459 = vsub.s32 32, %v1458
        %v1460 = vshll.u32 %v1451, %v1458
        %v1461 = vshrl.u32 %v1443, %v1459
        %v1462 = vor.u32 %v1460, %v1461
        %v1463 = vsub.s32 4294967266, %v1458
        %v1464 = vadd.s32 %v1463, 127
        %v1465 = vshll.u32 %v1464, 23
        %v1466 = vor.u32 4788187, %v1465
        %v1467 = vand.u32 2147483647, %v1466
        %v1469 = vcvt.s32.f32 %v1462
        %v1470 = vmul.f32 %v1469, %v1467
        %v1471 = vxor.u32 %v1470, 2147483648
        %v1472 = vsel %vm1351, %v1471, %v1470
        %v1473 = vsub.s32 4, %v1449
        %v1474 = vsel %vm1351, %v1473, %v1449
        %v1475 = vsel %vm1350, %v1193, %v1472
        %v1476 = vsel %vm1350, 0, %v1474
        %v1477 = vmul.f32 %v1475, %v1475
        %v1478 = vmul.f32 %v1477, -0.001358992
        %v1479 = vadd.f32 %v1478, 0.041655596
        %v1480 = vmul.f32 %v1477, %v1479
        %v1481 = vadd.f32 %v1480, -0.4999988
        %v1482 = vmul.f32 %v1477, %v1481
        %v1483 = vadd.f32 1.0, %v1482
        %v1484 = vmul.f32 %v1475, %v1475
        %v1485 = vmul.f32 %v1484, -0.00019511016
        %v1486 = vadd.f32 %v1485, 0.008332121
        %v1487 = vmul.f32 %v1484, %v1486
        %v1488 = vadd.f32 %v1487, -0.16666654
        %v1489 = vmul.f32 %v1484, %v1488
        %v1490 = vadd.f32 %v1489, 1.0
        %v1491 = vmul.f32 %v1490, %v1475
        %vm1492 = vweird.f32 %v1193
        %v1493 = vadd.s32 %v1476, 3
        %v1494 = vand.u32 %v1493, 3
        %vm1495 = vcmp.lt.s32.totalorder %v1494, 2
        %vm1496 = vcmp.eq.s32.totalorder %v1494, 0
        %v1497 = vxor.u32 %v1491, 2147483648
        %v1498 = vsel %vm1496, %v1483, %v1497
        %vm1499 = vcmp.eq.s32.totalorder %v1494, 2
        %v1500 = vxor.u32 %v1483, 2147483648
        %v1501 = vsel %vm1499, %v1500, %v1491
        %v1502 = vsel %vm1495, %v1498, %v1501
        %v1503 = vsel %vm1492, nan, %v1502
        %v1504 = vld [vmem:[#allocation11] sm:$0xff]
        %v1505 = vld [vmem:[#allocation11 + $0x8] sm:$0xff]
        %v1506 = vld [vmem:[#allocation11 + $0x10] sm:$0xff]
        %v1507 = vld [vmem:[#allocation11 + $0x18] sm:$0xff]
        %v1508 = vld [vmem:[#allocation11 + $0x20] sm:$0xff]
        %v1509 = vld [vmem:[#allocation11 + $0x28] sm:$0xff]
        %v1510 = vld [vmem:[#allocation11 + $0x30] sm:$0xff]
        %v1511 = vld [vmem:[#allocation11 + $0x38] sm:$0xff]
        %v1512 = vld [vmem:[#allocation11 + $0x40] sm:$0xff]
        %v1513 = vld [vmem:[#allocation11 + $0x48] sm:$0xff]
        %v1514 = vld [vmem:[#allocation11 + $0x50] sm:$0xff]
        %v1515 = vld [vmem:[#allocation11 + $0x58] sm:$0xff]
        %v1516 = vld [vmem:[#allocation11 + $0x60] sm:$0xff]
        %v1517 = vld [vmem:[#allocation11 + $0x68] sm:$0xff]
        %v1518 = vld [vmem:[#allocation11 + $0x70] sm:$0xff]
        %v1519 = vld [vmem:[#allocation11 + $0x78] sm:$0xff]
        %v1520 = vld [vmem:[#allocation11 + $0x80] sm:$0xff]
        %v1521 = vld [vmem:[#allocation11 + $0x88] sm:$0xff]
        %v1522 = vld [vmem:[#allocation11 + $0x90] sm:$0xff]
        %v1523 = vld [vmem:[#allocation11 + $0x98] sm:$0xff]
        %v1524 = vld [vmem:[#allocation11 + $0xa0] sm:$0xff]
        %v1525 = vld [vmem:[#allocation11 + $0xa8] sm:$0xff]
        %v1526 = vld [vmem:[#allocation11 + $0xb0] sm:$0xff]
        %v1527 = vld [vmem:[#allocation11 + $0xb8] sm:$0xff]
        %v1528 = vld [vmem:[#allocation11 + $0xc0] sm:$0xff]
        %v1529 = vld [vmem:[#allocation11 + $0xc8] sm:$0xff]
        %v1530 = vld [vmem:[#allocation11 + $0xd0] sm:$0xff]
        %v1531 = vld [vmem:[#allocation11 + $0xd8] sm:$0xff]
        %v1532 = vld [vmem:[#allocation11 + $0xe0] sm:$0xff]
        %v1533 = vld [vmem:[#allocation11 + $0xe8] sm:$0xff]
        %v1534 = vld [vmem:[#allocation11 + $0xf0] sm:$0xff]
        %v1535 = vld [vmem:[#allocation11 + $0xf8] sm:$0xff]
        %v1536 = vld [vmem:[#allocation11 + $0x100] sm:$0xff]
        %v1537 = vld [vmem:[#allocation11 + $0x108] sm:$0xff]
        %v1538 = vld [vmem:[#allocation11 + $0x110] sm:$0xff]
        %v1539 = vld [vmem:[#allocation11 + $0x118] sm:$0xff]
        %v1540 = vld [vmem:[#allocation11 + $0x120] sm:$0xff]
        %v1541 = vld [vmem:[#allocation11 + $0x128] sm:$0xff]
        %v1542 = vld [vmem:[#allocation11 + $0x130] sm:$0xff]
        %v1543 = vld [vmem:[#allocation11 + $0x138] sm:$0xff]
        %v1544 = vld [vmem:[#allocation11 + $0x140] sm:$0xff]
        %v1545 = vld [vmem:[#allocation11 + $0x148] sm:$0xff]
        %v1546 = vld [vmem:[#allocation11 + $0x150] sm:$0xff]
        %v1547 = vld [vmem:[#allocation11 + $0x158] sm:$0xff]
        %v1548 = vld [vmem:[#allocation11 + $0x160] sm:$0xff]
        %v1549 = vld [vmem:[#allocation11 + $0x168] sm:$0xff]
        %v1550 = vld [vmem:[#allocation11 + $0x170] sm:$0xff]
        %v1551 = vld [vmem:[#allocation11 + $0x178] sm:$0xff]
        %v1552 = vld [vmem:[#allocation11 + $0x180] sm:$0xff]
        %v1553 = vld [vmem:[#allocation11 + $0x188] sm:$0xff]
        %v1554 = vld [vmem:[#allocation11 + $0x190] sm:$0xff]
        %v1555 = vld [vmem:[#allocation11 + $0x198] sm:$0xff]
        %v1556 = vld [vmem:[#allocation11 + $0x1a0] sm:$0xff]
        %v1557 = vld [vmem:[#allocation11 + $0x1a8] sm:$0xff]
        %v1558 = vld [vmem:[#allocation11 + $0x1b0] sm:$0xff]
        %v1559 = vld [vmem:[#allocation11 + $0x1b8] sm:$0xff]
        %v1560 = vld [vmem:[#allocation11 + $0x1c0] sm:$0xff]
        %v1561 = vld [vmem:[#allocation11 + $0x1c8] sm:$0xff]
        %v1562 = vld [vmem:[#allocation11 + $0x1d0] sm:$0xff]
        %v1563 = vld [vmem:[#allocation11 + $0x1d8] sm:$0xff]
        %v1564 = vld [vmem:[#allocation11 + $0x1e0] sm:$0xff]
        %v1565 = vld [vmem:[#allocation11 + $0x1e8] sm:$0xff]
        %v1566 = vld [vmem:[#allocation11 + $0x1f0] sm:$0xff]
        %v1567 = vld [vmem:[#allocation11 + $0x1f8] sm:$0xff]
        %v1568 = vld [vmem:[%s7] sm:$0x3]
        %v1570 = vperm.slane %v1568, 0
        %v1571 = vperm.slane %v1568, 1
        %1574 = vmatpush.msra.mxu0 %v1534
        %1575 = vmatpush.msra.mxu0 %v1532
        %1576 = vmatpush.msra.mxu0 %v1530
        %1577 = vmatpush.msra.mxu0 %v1528
        %1578 = vmatpush.msra.mxu0 %v1526
        %1579 = vmatpush.msra.mxu0 %v1524
        %1580 = vmatpush.msra.mxu0 %v1522
        %1581 = vmatpush.msra.mxu0 %v1520
        %1582 = vmatpush.msra.mxu0 %v1518
        %1583 = vmatpush.msra.mxu0 %v1516
        %1584 = vmatpush.msra.mxu0 %v1514
        %1585 = vmatpush.msra.mxu0 %v1512
        %1586 = vmatpush.msra.mxu0 %v1510
        %1587 = vmatpush.msra.mxu0 %v1508
        %1588 = vmatpush.msra.mxu0 %v1506
        %1589 = vmatpush.msra.mxu0 %v1504
        %1590 = vmatmul.f32.gmra.mxu0 %v1348
        %v1591 = vpop.f32.mrf.mxu0
        %v1592 = vadd.f32 %v1570, %v1591
        %1593 = vdwg.mxu0
        %1594 = vmatpush.msra.mxu0 %v1566
        %1595 = vmatpush.msra.mxu0 %v1564
        %1596 = vmatpush.msra.mxu0 %v1562
        %1597 = vmatpush.msra.mxu0 %v1560
        %1598 = vmatpush.msra.mxu0 %v1558
        %1599 = vmatpush.msra.mxu0 %v1556
        %1600 = vmatpush.msra.mxu0 %v1554
        %1601 = vmatpush.msra.mxu0 %v1552
        %1602 = vmatpush.msra.mxu0 %v1550
        %1603 = vmatpush.msra.mxu0 %v1548
        %1604 = vmatpush.msra.mxu0 %v1546
        %1605 = vmatpush.msra.mxu0 %v1544
        %1606 = vmatpush.msra.mxu0 %v1542
        %1607 = vmatpush.msra.mxu0 %v1540
        %1608 = vmatpush.msra.mxu0 %v1538
        %1609 = vmatpush.msra.mxu0 %v1536
        %1610 = vmatmul.f32.gmra.mxu0 %v1503
        %v1611 = vpop.f32.mrf.mxu0
        %v1612 = vadd.f32 %v1592, %v1611
        %1613 = vdwg.mxu0
        %1614 = vmatpush.msra.mxu0 %v1535
        %1615 = vmatpush.msra.mxu0 %v1533
        %1616 = vmatpush.msra.mxu0 %v1531
        %1617 = vmatpush.msra.mxu0 %v1529
        %1618 = vmatpush.msra.mxu0 %v1527
        %1619 = vmatpush.msra.mxu0 %v1525
        %1620 = vmatpush.msra.mxu0 %v1523
        %1621 = vmatpush.msra.mxu0 %v1521
        %1622 = vmatpush.msra.mxu0 %v1519
        %1623 = vmatpush.msra.mxu0 %v1517
        %1624 = vmatpush.msra.mxu0 %v1515
        %1625 = vmatpush.msra.mxu0 %v1513
        %1626 = vmatpush.msra.mxu0 %v1511
        %1627 = vmatpush.msra.mxu0 %v1509
        %1628 = vmatpush.msra.mxu0 %v1507
        %1629 = vmatpush.msra.mxu0 %v1505
        %1630 = vmatmul.f32.gmra.mxu0 %v1348
        %v1631 = vpop.f32.mrf.mxu0
        %v1632 = vadd.f32 %v1571, %v1631
        %1633 = vdwg.mxu0
        %1634 = vmatpush.msra.mxu0 %v1567
        %1635 = vmatpush.msra.mxu0 %v1565
        %1636 = vmatpush.msra.mxu0 %v1563
        %1637 = vmatpush.msra.mxu0 %v1561
        %1638 = vmatpush.msra.mxu0 %v1559
        %1639 = vmatpush.msra.mxu0 %v1557
        %1640 = vmatpush.msra.mxu0 %v1555
        %1641 = vmatpush.msra.mxu0 %v1553
        %1642 = vmatpush.msra.mxu0 %v1551
        %1643 = vmatpush.msra.mxu0 %v1549
        %1644 = vmatpush.msra.mxu0 %v1547
        %1645 = vmatpush.msra.mxu0 %v1545
        %1646 = vmatpush.msra.mxu0 %v1543
        %1647 = vmatpush.msra.mxu0 %v1541
        %1648 = vmatpush.msra.mxu0 %v1539
        %1649 = vmatpush.msra.mxu0 %v1537
        %1650 = vmatmul.f32.gmra.mxu0 %v1503
        %v1651 = vpop.f32.mrf.mxu0
        %v1652 = vadd.f32 %v1632, %v1651
        %1653 = vdwg.mxu0
        %v1654 = vadd.f32 %v1612, %v503
        %v1655 = vadd.f32 %v1652, %v504
        %v1656 = vand.u32 2147483647, %v1654
        %vm1657 = vcmp.le.f32.partialorder %v1656, 0.7853982
        %vm1658 = vcmp.lt.s32.totalorder %v1654, 0
        %v1659 = vand.u32 %v1654, 2139095040
        %v1660 = vshrl.u32 %v1659, 23
        %v1661 = vsub.s32 %v1660, 127
        %v1662 = vand.u32 2147483647, %v1654
        %v1663 = vand.u32 %v1662, 8388607
        %v1664 = vor.u32 %v1663, 8388608
        %v1665 = vsub.s32 0, %v1664
        %v1666 = vadd.s32 %v1661, 1
        %vm1667 = vcmp.gt.s32.totalorder %v1666, 0
        %v1668 = vsel %vm1667, %v1666, 0
        %v1669 = vshrl.u32 %v1668, 5
        %v1670 = vand.u32 %v1668, 31
        %v1671 = vsub.s32 32, %v1670
        %v1672 = vshrl.u32 683565275, %v1671
        %v1673 = vshll.u32 683565275, %v1670
        %v1674 = vshrl.u32 2475754826, %v1671
        %v1675 = vor.u32 %v1673, %v1674
        %v1676 = vshll.u32 2475754826, %v1670
        %v1677 = vshrl.u32 2131351028, %v1671
        %v1678 = vor.u32 %v1676, %v1677
        %v1679 = vshll.u32 2131351028, %v1670
        %v1680 = vshrl.u32 2102212464, %v1671
        %v1681 = vor.u32 %v1679, %v1680
        %v1682 = vshll.u32 2102212464, %v1670
        %v1683 = vshrl.u32 920167782, %v1671
        %v1684 = vor.u32 %v1682, %v1683
        %v1685 = vshll.u32 920167782, %v1670
        %v1686 = vshrl.u32 1326507024, %v1671
        %v1687 = vor.u32 %v1685, %v1686
        %vm1688 = vcmp.lt.s32.totalorder %v1669, 1
        %vm1689 = vcmp.lt.s32.totalorder %v1669, 2
        %vm1690 = vcmp.lt.s32.totalorder %v1669, 3
        %vm1691 = vcmp.lt.s32.totalorder %v1669, 4
        %v1692 = vsel %vm1688, %v1672, %v1675
        %v1693 = vsel %vm1691, %v1681, 2102212464
        %v1694 = vsel %vm1690, %v1678, %v1693
        %v1695 = vsel %vm1689, %v1692, %v1694
        %v1696 = vsel %vm1688, %v1675, %v1678
        %v1697 = vsel %vm1691, %v1684, 920167782
        %v1698 = vsel %vm1690, %v1681, %v1697
        %v1699 = vsel %vm1689, %v1696, %v1698
        %v1700 = vsel %vm1688, %v1678, %v1681
        %v1701 = vsel %vm1691, %v1687, 1326507024
        %v1702 = vsel %vm1690, %v1684, %v1701
        %v1703 = vsel %vm1689, %v1700, %v1702
        %v1704 = vshll.u32 %v1664, 8
        %v1705 = vand.u32 %v1704, 65535
        %v1706 = vshrl.u32 %v1704, 16
        %v1707 = vand.u32 %v1703, 65535
        %v1708 = vshrl.u32 %v1703, 16
        %v1709 = vmul.u32 %v1705, %v1707
        %v1710 = vmul.u32 %v1705, %v1708
        %v1711 = vmul.u32 %v1706, %v1707
        %v1712 = vmul.u32 %v1706, %v1708
        %v1713 = vshll.u32 %v1710, 16
        %v1714 = vshrl.u32 %v1710, 16
        %v1715 = vshll.u32 %v1711, 16
        %v1716 = vshrl.u32 %v1711, 16
        %vm1717 = vc.u32 %v1709, %v1713
        %v1718 = vsel %vm1717, 1, 0
        %v1719 = vadd.s32 %v1709, %v1713
        %v1720 = vadd.s32 %v1712, %v1718
        %vm1721 = vc.u32 %v1719, %v1715
        %v1722 = vsel %vm1721, 1, 0
        %v1723 = vadd.s32 %v1719, %v1715
        %v1724 = vadd.s32 %v1720, %v1722
        %v1725 = vadd.s32 %v1724, %v1714
        %v1726 = vadd.s32 %v1725, %v1716
        %v1727 = vand.u32 %v1704, 65535
        %v1728 = vshrl.u32 %v1704, 16
        %v1729 = vand.u32 %v1699, 65535
        %v1730 = vshrl.u32 %v1699, 16
        %v1731 = vmul.u32 %v1727, %v1729
        %v1732 = vmul.u32 %v1727, %v1730
        %v1733 = vmul.u32 %v1728, %v1729
        %v1734 = vmul.u32 %v1728, %v1730
        %v1735 = vshll.u32 %v1732, 16
        %v1736 = vshrl.u32 %v1732, 16
        %v1737 = vshll.u32 %v1733, 16
        %v1738 = vshrl.u32 %v1733, 16
        %vm1739 = vc.u32 %v1731, %v1735
        %v1740 = vsel %vm1739, 1, 0
        %v1741 = vadd.s32 %v1731, %v1735
        %v1742 = vadd.s32 %v1734, %v1740
        %vm1743 = vc.u32 %v1741, %v1737
        %v1744 = vsel %vm1743, 1, 0
        %v1745 = vadd.s32 %v1741, %v1737
        %v1746 = vadd.s32 %v1742, %v1744
        %v1747 = vadd.s32 %v1746, %v1736
        %v1748 = vadd.s32 %v1747, %v1738
        %v1749 = vmul.u32 %v1704, %v1695
        %v1750 = vadd.s32 %v1726, %v1745
        %vm1751 = vc.u32 %v1726, %v1745
        %v1752 = vadd.s32 %v1748, 1
        %v1753 = vsel %vm1751, %v1752, %v1748
        %v1754 = vadd.s32 %v1749, %v1753
        %v1755 = vadd.s32 %v1754, 536870912
        %v1756 = vshrl.u32 %v1755, 30
        %v1757 = vshll.u32 %v1756, 30
        %v1758 = vsub.s32 %v1754, %v1757
        %vm1759 = vcmp.lt.s32.totalorder %v1758, 0
        %v1760 = vsub.s32 0, %v1758
        %v1761 = vsel %vm1759, %v1760, %v1758
        %v1762 = vclz %v1761
        %v1763 = vsub.s32 %v1762, 2
        %vm1764 = vcmp.gt.s32.totalorder 0, %v1763
        %v1765 = vsel %vm1764, 0, %v1763
        %v1766 = vsub.s32 32, %v1765
        %v1767 = vshll.u32 %v1758, %v1765
        %v1768 = vshrl.u32 %v1750, %v1766
        %v1769 = vor.u32 %v1767, %v1768
        %v1770 = vsub.s32 4294967266, %v1765
        %v1771 = vadd.s32 %v1770, 127
        %v1772 = vshll.u32 %v1771, 23
        %v1773 = vor.u32 4788187, %v1772
        %v1774 = vand.u32 2147483647, %v1773
        %v1776 = vcvt.s32.f32 %v1769
        %v1777 = vmul.f32 %v1776, %v1774
        %v1778 = vxor.u32 %v1777, 2147483648
        %v1779 = vsel %vm1658, %v1778, %v1777
        %v1780 = vsub.s32 4, %v1756
        %v1781 = vsel %vm1658, %v1780, %v1756
        %v1782 = vsel %vm1657, %v1654, %v1779
        %v1783 = vsel %vm1657, 0, %v1781
        %v1784 = vmul.f32 %v1782, %v1782
        %v1785 = vmul.f32 %v1784, -0.001358992
        %v1786 = vadd.f32 %v1785, 0.041655596
        %v1787 = vmul.f32 %v1784, %v1786
        %v1788 = vadd.f32 %v1787, -0.4999988
        %v1789 = vmul.f32 %v1784, %v1788
        %v1790 = vadd.f32 1.0, %v1789
        %v1791 = vmul.f32 %v1782, %v1782
        %v1792 = vmul.f32 %v1791, -0.00019511016
        %v1793 = vadd.f32 %v1792, 0.008332121
        %v1794 = vmul.f32 %v1791, %v1793
        %v1795 = vadd.f32 %v1794, -0.16666654
        %v1796 = vmul.f32 %v1791, %v1795
        %v1797 = vadd.f32 %v1796, 1.0
        %v1798 = vmul.f32 %v1797, %v1782
        %vm1799 = vweird.f32 %v1654
        %v1800 = vadd.s32 %v1783, 3
        %v1801 = vand.u32 %v1800, 3
        %vm1802 = vcmp.lt.s32.totalorder %v1801, 2
        %vm1803 = vcmp.eq.s32.totalorder %v1801, 0
        %v1804 = vxor.u32 %v1798, 2147483648
        %v1805 = vsel %vm1803, %v1790, %v1804
        %vm1806 = vcmp.eq.s32.totalorder %v1801, 2
        %v1807 = vxor.u32 %v1790, 2147483648
        %v1808 = vsel %vm1806, %v1807, %v1798
        %v1809 = vsel %vm1802, %v1805, %v1808
        %v1810 = vsel %vm1799, nan, %v1809
        %v1811 = vand.u32 2147483647, %v1655
        %vm1812 = vcmp.le.f32.partialorder %v1811, 0.7853982
        %vm1813 = vcmp.lt.s32.totalorder %v1655, 0
        %v1814 = vand.u32 %v1655, 2139095040
        %v1815 = vshrl.u32 %v1814, 23
        %v1816 = vsub.s32 %v1815, 127
        %v1817 = vand.u32 2147483647, %v1655
        %v1818 = vand.u32 %v1817, 8388607
        %v1819 = vor.u32 %v1818, 8388608
        %v1820 = vsub.s32 0, %v1819
        %v1821 = vadd.s32 %v1816, 1
        %vm1822 = vcmp.gt.s32.totalorder %v1821, 0
        %v1823 = vsel %vm1822, %v1821, 0
        %v1824 = vshrl.u32 %v1823, 5
        %v1825 = vand.u32 %v1823, 31
        %v1826 = vsub.s32 32, %v1825
        %v1827 = vshrl.u32 683565275, %v1826
        %v1828 = vshll.u32 683565275, %v1825
        %v1829 = vshrl.u32 2475754826, %v1826
        %v1830 = vor.u32 %v1828, %v1829
        %v1831 = vshll.u32 2475754826, %v1825
        %v1832 = vshrl.u32 2131351028, %v1826
        %v1833 = vor.u32 %v1831, %v1832
        %v1834 = vshll.u32 2131351028, %v1825
        %v1835 = vshrl.u32 2102212464, %v1826
        %v1836 = vor.u32 %v1834, %v1835
        %v1837 = vshll.u32 2102212464, %v1825
        %v1838 = vshrl.u32 920167782, %v1826
        %v1839 = vor.u32 %v1837, %v1838
        %v1840 = vshll.u32 920167782, %v1825
        %v1841 = vshrl.u32 1326507024, %v1826
        %v1842 = vor.u32 %v1840, %v1841
        %vm1843 = vcmp.lt.s32.totalorder %v1824, 1
        %vm1844 = vcmp.lt.s32.totalorder %v1824, 2
        %vm1845 = vcmp.lt.s32.totalorder %v1824, 3
        %vm1846 = vcmp.lt.s32.totalorder %v1824, 4
        %v1847 = vsel %vm1843, %v1827, %v1830
        %v1848 = vsel %vm1846, %v1836, 2102212464
        %v1849 = vsel %vm1845, %v1833, %v1848
        %v1850 = vsel %vm1844, %v1847, %v1849
        %v1851 = vsel %vm1843, %v1830, %v1833
        %v1852 = vsel %vm1846, %v1839, 920167782
        %v1853 = vsel %vm1845, %v1836, %v1852
        %v1854 = vsel %vm1844, %v1851, %v1853
        %v1855 = vsel %vm1843, %v1833, %v1836
        %v1856 = vsel %vm1846, %v1842, 1326507024
        %v1857 = vsel %vm1845, %v1839, %v1856
        %v1858 = vsel %vm1844, %v1855, %v1857
        %v1859 = vshll.u32 %v1819, 8
        %v1860 = vand.u32 %v1859, 65535
        %v1861 = vshrl.u32 %v1859, 16
        %v1862 = vand.u32 %v1858, 65535
        %v1863 = vshrl.u32 %v1858, 16
        %v1864 = vmul.u32 %v1860, %v1862
        %v1865 = vmul.u32 %v1860, %v1863
        %v1866 = vmul.u32 %v1861, %v1862
        %v1867 = vmul.u32 %v1861, %v1863
        %v1868 = vshll.u32 %v1865, 16
        %v1869 = vshrl.u32 %v1865, 16
        %v1870 = vshll.u32 %v1866, 16
        %v1871 = vshrl.u32 %v1866, 16
        %vm1872 = vc.u32 %v1864, %v1868
        %v1873 = vsel %vm1872, 1, 0
        %v1874 = vadd.s32 %v1864, %v1868
        %v1875 = vadd.s32 %v1867, %v1873
        %vm1876 = vc.u32 %v1874, %v1870
        %v1877 = vsel %vm1876, 1, 0
        %v1878 = vadd.s32 %v1874, %v1870
        %v1879 = vadd.s32 %v1875, %v1877
        %v1880 = vadd.s32 %v1879, %v1869
        %v1881 = vadd.s32 %v1880, %v1871
        %v1882 = vand.u32 %v1859, 65535
        %v1883 = vshrl.u32 %v1859, 16
        %v1884 = vand.u32 %v1854, 65535
        %v1885 = vshrl.u32 %v1854, 16
        %v1886 = vmul.u32 %v1882, %v1884
        %v1887 = vmul.u32 %v1882, %v1885
        %v1888 = vmul.u32 %v1883, %v1884
        %v1889 = vmul.u32 %v1883, %v1885
        %v1890 = vshll.u32 %v1887, 16
        %v1891 = vshrl.u32 %v1887, 16
        %v1892 = vshll.u32 %v1888, 16
        %v1893 = vshrl.u32 %v1888, 16
        %vm1894 = vc.u32 %v1886, %v1890
        %v1895 = vsel %vm1894, 1, 0
        %v1896 = vadd.s32 %v1886, %v1890
        %v1897 = vadd.s32 %v1889, %v1895
        %vm1898 = vc.u32 %v1896, %v1892
        %v1899 = vsel %vm1898, 1, 0
        %v1900 = vadd.s32 %v1896, %v1892
        %v1901 = vadd.s32 %v1897, %v1899
        %v1902 = vadd.s32 %v1901, %v1891
        %v1903 = vadd.s32 %v1902, %v1893
        %v1904 = vmul.u32 %v1859, %v1850
        %v1905 = vadd.s32 %v1881, %v1900
        %vm1906 = vc.u32 %v1881, %v1900
        %v1907 = vadd.s32 %v1903, 1
        %v1908 = vsel %vm1906, %v1907, %v1903
        %v1909 = vadd.s32 %v1904, %v1908
        %v1910 = vadd.s32 %v1909, 536870912
        %v1911 = vshrl.u32 %v1910, 30
        %v1912 = vshll.u32 %v1911, 30
        %v1913 = vsub.s32 %v1909, %v1912
        %vm1914 = vcmp.lt.s32.totalorder %v1913, 0
        %v1915 = vsub.s32 0, %v1913
        %v1916 = vsel %vm1914, %v1915, %v1913
        %v1917 = vclz %v1916
        %v1918 = vsub.s32 %v1917, 2
        %vm1919 = vcmp.gt.s32.totalorder 0, %v1918
        %v1920 = vsel %vm1919, 0, %v1918
        %v1921 = vsub.s32 32, %v1920
        %v1922 = vshll.u32 %v1913, %v1920
        %v1923 = vshrl.u32 %v1905, %v1921
        %v1924 = vor.u32 %v1922, %v1923
        %v1925 = vsub.s32 4294967266, %v1920
        %v1926 = vadd.s32 %v1925, 127
        %v1927 = vshll.u32 %v1926, 23
        %v1928 = vor.u32 4788187, %v1927
        %v1929 = vand.u32 2147483647, %v1928
        %v1931 = vcvt.s32.f32 %v1924
        %v1932 = vmul.f32 %v1931, %v1929
        %v1933 = vxor.u32 %v1932, 2147483648
        %v1934 = vsel %vm1813, %v1933, %v1932
        %v1935 = vsub.s32 4, %v1911
        %v1936 = vsel %vm1813, %v1935, %v1911
        %v1937 = vsel %vm1812, %v1655, %v1934
        %v1938 = vsel %vm1812, 0, %v1936
        %v1939 = vmul.f32 %v1937, %v1937
        %v1940 = vmul.f32 %v1939, -0.001358992
        %v1941 = vadd.f32 %v1940, 0.041655596
        %v1942 = vmul.f32 %v1939, %v1941
        %v1943 = vadd.f32 %v1942, -0.4999988
        %v1944 = vmul.f32 %v1939, %v1943
        %v1945 = vadd.f32 1.0, %v1944
        %v1946 = vmul.f32 %v1937, %v1937
        %v1947 = vmul.f32 %v1946, -0.00019511016
        %v1948 = vadd.f32 %v1947, 0.008332121
        %v1949 = vmul.f32 %v1946, %v1948
        %v1950 = vadd.f32 %v1949, -0.16666654
        %v1951 = vmul.f32 %v1946, %v1950
        %v1952 = vadd.f32 %v1951, 1.0
        %v1953 = vmul.f32 %v1952, %v1937
        %vm1954 = vweird.f32 %v1655
        %v1955 = vadd.s32 %v1938, 3
        %v1956 = vand.u32 %v1955, 3
        %vm1957 = vcmp.lt.s32.totalorder %v1956, 2
        %vm1958 = vcmp.eq.s32.totalorder %v1956, 0
        %v1959 = vxor.u32 %v1953, 2147483648
        %v1960 = vsel %vm1958, %v1945, %v1959
        %vm1961 = vcmp.eq.s32.totalorder %v1956, 2
        %v1962 = vxor.u32 %v1945, 2147483648
        %v1963 = vsel %vm1961, %v1962, %v1953
        %v1964 = vsel %vm1957, %v1960, %v1963
        %v1965 = vsel %vm1954, nan, %v1964
        %v1966 = vld [vmem:[#allocation13] sm:$0xff]
        %v1967 = vld [vmem:[#allocation13 + $0x8] sm:$0xff]
        %v1968 = vld [vmem:[#allocation13 + $0x10] sm:$0xff]
        %v1969 = vld [vmem:[#allocation13 + $0x18] sm:$0xff]
        %v1970 = vld [vmem:[#allocation13 + $0x20] sm:$0xff]
        %v1971 = vld [vmem:[#allocation13 + $0x28] sm:$0xff]
        %v1972 = vld [vmem:[#allocation13 + $0x30] sm:$0xff]
        %v1973 = vld [vmem:[#allocation13 + $0x38] sm:$0xff]
        %v1974 = vld [vmem:[#allocation13 + $0x40] sm:$0xff]
        %v1975 = vld [vmem:[#allocation13 + $0x48] sm:$0xff]
        %v1976 = vld [vmem:[#allocation13 + $0x50] sm:$0xff]
        %v1977 = vld [vmem:[#allocation13 + $0x58] sm:$0xff]
        %v1978 = vld [vmem:[#allocation13 + $0x60] sm:$0xff]
        %v1979 = vld [vmem:[#allocation13 + $0x68] sm:$0xff]
        %v1980 = vld [vmem:[#allocation13 + $0x70] sm:$0xff]
        %v1981 = vld [vmem:[#allocation13 + $0x78] sm:$0xff]
        %v1982 = vld [vmem:[#allocation13 + $0x80] sm:$0xff]
        %v1983 = vld [vmem:[#allocation13 + $0x88] sm:$0xff]
        %v1984 = vld [vmem:[#allocation13 + $0x90] sm:$0xff]
        %v1985 = vld [vmem:[#allocation13 + $0x98] sm:$0xff]
        %v1986 = vld [vmem:[#allocation13 + $0xa0] sm:$0xff]
        %v1987 = vld [vmem:[#allocation13 + $0xa8] sm:$0xff]
        %v1988 = vld [vmem:[#allocation13 + $0xb0] sm:$0xff]
        %v1989 = vld [vmem:[#allocation13 + $0xb8] sm:$0xff]
        %v1990 = vld [vmem:[#allocation13 + $0xc0] sm:$0xff]
        %v1991 = vld [vmem:[#allocation13 + $0xc8] sm:$0xff]
        %v1992 = vld [vmem:[#allocation13 + $0xd0] sm:$0xff]
        %v1993 = vld [vmem:[#allocation13 + $0xd8] sm:$0xff]
        %v1994 = vld [vmem:[#allocation13 + $0xe0] sm:$0xff]
        %v1995 = vld [vmem:[#allocation13 + $0xe8] sm:$0xff]
        %v1996 = vld [vmem:[#allocation13 + $0xf0] sm:$0xff]
        %v1997 = vld [vmem:[#allocation13 + $0xf8] sm:$0xff]
        %v1998 = vld [vmem:[%s9] sm:$0x1]
        %v2000 = vperm.slane %v1998, 0
        %2002 = vmatpush.msra.mxu0 %v1981
        %2003 = vmatpush.msra.mxu0 %v1980
        %2004 = vmatpush.msra.mxu0 %v1979
        %2005 = vmatpush.msra.mxu0 %v1978
        %2006 = vmatpush.msra.mxu0 %v1977
        %2007 = vmatpush.msra.mxu0 %v1976
        %2008 = vmatpush.msra.mxu0 %v1975
        %2009 = vmatpush.msra.mxu0 %v1974
        %2010 = vmatpush.msra.mxu0 %v1973
        %2011 = vmatpush.msra.mxu0 %v1972
        %2012 = vmatpush.msra.mxu0 %v1971
        %2013 = vmatpush.msra.mxu0 %v1970
        %2014 = vmatpush.msra.mxu0 %v1969
        %2015 = vmatpush.msra.mxu0 %v1968
        %2016 = vmatpush.msra.mxu0 %v1967
        %2017 = vmatpush.msra.mxu0 %v1966
        %2018 = vmatmul.f32.gmra.mxu0 %v1810
        %v2019 = vpop.f32.mrf.mxu0
        %v2020 = vadd.f32 %v2000, %v2019
        %2021 = vdwg.mxu0
        %2022 = vmatpush.msra.mxu0 %v1997
        %2023 = vmatpush.msra.mxu0 %v1996
        %2024 = vmatpush.msra.mxu0 %v1995
        %2025 = vmatpush.msra.mxu0 %v1994
        %2026 = vmatpush.msra.mxu0 %v1993
        %2027 = vmatpush.msra.mxu0 %v1992
        %2028 = vmatpush.msra.mxu0 %v1991
        %2029 = vmatpush.msra.mxu0 %v1990
        %2030 = vmatpush.msra.mxu0 %v1989
        %2031 = vmatpush.msra.mxu0 %v1988
        %2032 = vmatpush.msra.mxu0 %v1987
        %2033 = vmatpush.msra.mxu0 %v1986
        %2034 = vmatpush.msra.mxu0 %v1985
        %2035 = vmatpush.msra.mxu0 %v1984
        %2036 = vmatpush.msra.mxu0 %v1983
        %2037 = vmatpush.msra.mxu0 %v1982
        %2038 = vmatmul.f32.gmra.mxu0 %v1965
        %v2039 = vpop.f32.mrf.mxu0
        %v2040 = vadd.f32 %v2020, %v2039
        %2041 = vdwg.mxu0
        %2042 = vst [vmem:[%s473] sm:$0xff] %v2040
        %s2043 = sand.u32 %s253, 1
        %s2044 = scalar_lea.sflag [#allocation4], %s2043
        %s2045 = sand.u32 %s253, 1
        %s2046 = smul.addr %s2045, 8
        %s2047 = scalar_lea.vmem [#allocation14], %s2046
        // Predicated region
        $region89: #{tpu_custom_call.1} parent=59 // pred_check
          %p2048 = pneg %p263
        $region90: #{tpu_custom_call.1} parent=59 // pred_check_branch
          %2050 = sbr.rel (%p2048) target = $region92
        $region91: #{tpu_custom_call.1} parent=59 // pred_region
          %2052 = vsyncadd %s2044, 0
          %s2053 = smul.addr %s30, 8
          %s2054 = scalar_lea.hbm %s10, %s2053
          %s2056 = sshll.u32 %s2047, 4
          %s2057 = int_to_ptr.vmem [resolvable:$true] %s2056
          %s2058 = sshll.u32 %s2054, 4
          %s2059 = int_to_ptr.hbm [resolvable:$true] %s2058
          %2061 = dma.vmem_to_hbm [thread:$0]  %s2057, 128, %s2059, %s2044
        $region92: #{tpu_custom_call.1} parent=59 // pred_fallthru
          _
      $region60: #{tpu_custom_call.1} parent=5 // pred_fallthru
        _
      %p2062 = scmp.le.s32.totalorder 2, %s25
      // Predicated region
      $region93: #{tpu_custom_call.1} parent=5 // pred_check
        %p2063 = pneg %p2062
      $region94: #{tpu_custom_call.1} parent=5 // pred_check_branch
        %2065 = sbr.rel (%p2063) target = $region96
      $region95: #{tpu_custom_call.1} parent=5 // pred_region
        %s2066 = ssub.s32 %s25, 2
        // Predicated region
        $region97: #{tpu_custom_call.1} parent=95 // pred_check
          %p2067 = pneg %p269
        $region98: #{tpu_custom_call.1} parent=95 // pred_check_branch
          %2069 = sbr.rel (%p2067) target = $region100
        $region99: #{tpu_custom_call.1} parent=95 // pred_region
          %s2070 = sand.u32 %s254, 1
          %s2071 = scalar_lea.sflag [#allocation4], %s2070
          %s2072 = sand.u32 %s254, 1
          %s2073 = smul.addr %s2072, 8
          %s2074 = scalar_lea.vmem [#allocation14], %s2073
          %2076 = dma.done %s2071, 128
        $region100: #{tpu_custom_call.1} parent=95 // pred_fallthru
          _
      $region96: #{tpu_custom_call.1} parent=5 // pred_fallthru
        _
    $region6: #{tpu_custom_call.1} parent=1 // loop_footer
      %s29 = sadd.s32 1, %s25
    $region7: #{tpu_custom_call.1} parent=1 // loop_footer_branch
      %24 = sbr.rel target = $region3
    $region8: #{tpu_custom_call.1} parent=1 // loop_exit
      _
    %2077 = vsyncpa [#allocation3], 1
    %s2078 = scalar_lea.sflag [#allocation3], 1
    %2079 = vsyncpa %s2078, 1
    %2080 = vsyncpa [#allocation6], 1
    %2081 = vsyncpa [#allocation9], 1
    %2082 = vsyncpa [#allocation12], 1
    %2083 = vsyncpa [#allocation4], 1
    %s2084 = scalar_lea.sflag [#allocation4], 1
    %2085 = vsyncpa %s2084, 1

</llo_original>
